<compile_context>
chip_gen: v7x
topology: tpu7x:2x2x1
jax: 0.10.0
libtpu: 0.0.40
codegen_flags: <defaults>
</compile_context>

<pallas_src>
import numpy as np
import jax
import jax.numpy as jnp
from jax.experimental import pallas as pl
from jax.experimental.pallas import tpu as pltpu


def _round_up(x: int, m: int) -> int:
    return ((x + m - 1) // m) * m


def _sublane_multiple(dtype) -> int:
    # f32 -> 8, bf16 -> 16, int8/fp8 -> 32 (sublane packing of sub-32-bit dtypes).
    return max(8, 32 // jnp.dtype(dtype).itemsize)


def _vmem_budget_bytes() -> int:
    """Per-generation VMEM cap: ~40 MiB on 64 MiB parts (v7x), ~48 MiB otherwise."""
    phys = 64 * 2**20
    try:
        phys = int(getattr(pltpu.get_tpu_info(), "vmem_capacity_bytes", phys))
    except Exception:
        pass
    return (40 * 2**20) if phys <= 64 * 2**20 else (48 * 2**20)


def _make_bilinear_kernel(L: int, O_pad: int):
    lin_off = L * O_pad

    def kernel(left_ref, right_ref, a_ref, wl_ref, bias_ref, out_ref, p_ref):
        left = left_ref[...]                      # (Bt, L)   compute dtype
        right = right_ref[...]                    # (Bt, R)   compute dtype

        # Single fused MXU pass for everything contracting against `right`:
        #   P[:, i*O_pad + o] = sum_j right[:, j] * U[o, i, j]
        #   P[:, lin_off + o] = (right @ W_r^T)[:, o]
        p_ref[...] = jnp.dot(right, a_ref[...], preferred_element_type=jnp.float32)

        # Linear terms + bias (all f32 accumulation).
        acc = (jnp.dot(left, wl_ref[...], preferred_element_type=jnp.float32)
               + p_ref[:, pl.ds(lin_off, O_pad)]
               + bias_ref[...])

        # Bilinear reduce over i: lane-aligned VPU multiply-adds on O_pad slabs
        # (no one-hot selector matmuls, no relayouts).  L is a compile-time
        # constant, so the loop is statically unrolled with static slices.
        # TODO(synk): for very large left_features, switch to a fori_loop over
        # lane-aligned P slabs (or add a reduction grid axis) to bound code size.
        lf = left.astype(jnp.float32)
        for i in range(L):
            acc = acc + lf[:, i:i + 1] * p_ref[:, pl.ds(i * O_pad, O_pad)]

        out_ref[...] = acc.astype(out_ref.dtype)

    return kernel


def bilinear_forward(input_left, input_right, U, W_l, W_r, bias, *,
                     compute_dtype=jnp.bfloat16, out_dtype=None,
                     max_batch_tile=512):
    """Pallas implementation of BiLinear.forward."""
    left_size = tuple(input_left.shape)
    right_size = tuple(input_right.shape)
    assert left_size[:-1] == right_size[:-1], "batch dims mismatch"

    O, L, R = U.shape
    assert left_size[-1] == L and right_size[-1] == R
    assert W_l.shape == (O, L)
    # Faithful to the module: W_r is declared (out_features, left_features), so
    # the forward only type-checks when left_features == right_features.
    assert W_r.shape == (O, L) and L == R, (
        "BiLinear declares W_r as (out_features, left_features); its forward "
        "requires left_features == right_features")
    assert bias.shape == (O,)

    batch = int(np.prod(left_size[:-1])) if len(left_size) > 1 else 1
    out_dtype = jnp.dtype(input_left.dtype if out_dtype is None else out_dtype)
    cdt = jnp.dtype(compute_dtype)

    O_pad = _round_up(O, 128)          # lane-dense output slab
    lin_off = L * O_pad
    cols = lin_off + O_pad

    # ---- parameter layouts (plain JAX, done once outside the kernel) ----
    u_t = jnp.transpose(U, (1, 0, 2))                                 # (L, O, R)
    u_t = jnp.pad(u_t, ((0, 0), (0, O_pad - O), (0, 0)))              # (L, O_pad, R)
    u_big = jnp.transpose(u_t.reshape(lin_off, R))                    # (R, L*O_pad)
    wr_t = jnp.pad(jnp.transpose(W_r), ((0, 0), (0, O_pad - O)))      # (R, O_pad)
    a_mat = jnp.concatenate([u_big, wr_t], axis=1).astype(cdt)        # (R, cols)
    wl_t = jnp.pad(jnp.transpose(W_l), ((0, 0), (0, O_pad - O))).astype(cdt)  # (L, O_pad)
    bias2 = jnp.pad(bias.reshape(1, O).astype(jnp.float32),
                    ((0, 0), (0, O_pad - O)))                         # (1, O_pad) f32

    left2 = input_left.reshape(batch, L).astype(cdt)
    right2 = input_right.reshape(batch, R).astype(cdt)

    # ---- VMEM budgeting & adaptive batch tile ----
    esz_in = cdt.itemsize
    esz_out = out_dtype.itemsize
    budget = _vmem_budget_bytes()
    sub = max(_sublane_multiple(cdt), _sublane_multiple(out_dtype))

    resident = (a_mat.size + wl_t.size) * esz_in + bias2.size * 4

    def tile_bytes(bt):
        pipelined = 2 * bt * (L + R) * esz_in + 2 * bt * O_pad * esz_out
        scratch = bt * cols * 4                      # f32 P scratch (single-buffered)
        return pipelined + scratch

    if resident + tile_bytes(sub) > budget:
        # TODO(synk): for production out_features/left_features where the
        # resident U layout exceeds the VMEM budget, add a second ("arbitrary")
        # grid axis tiling out_features in O_pad-wide slabs instead of raising.
        raise ValueError(
            f"BiLinear weights need ~{(resident + tile_bytes(sub)) >> 20} MiB VMEM "
            f"(> {budget >> 20} MiB budget); out_features tiling not implemented.")

    b_ceil = _round_up(max(batch, 1), sub)
    bt, cand = sub, sub
    while cand <= min(max_batch_tile, b_ceil):
        if resident + tile_bytes(cand) <= budget:
            bt = cand
        cand *= 2

    b_pad = _round_up(batch, bt)
    if b_pad != batch:
        pad = ((0, b_pad - batch), (0, 0))
        left2 = jnp.pad(left2, pad)
        right2 = jnp.pad(right2, pad)
    nb = b_pad // bt

    vmem_limit = int(min(budget,
                         max(int(1.5 * (resident + tile_bytes(bt))), 16 * 2**20)))

    flops = 2 * b_pad * (R * cols + 2 * L * O_pad)
    bytes_accessed = (b_pad * (L + R) * esz_in + resident
                      + b_pad * O_pad * esz_out)

    out = pl.pallas_call(
        _make_bilinear_kernel(L, O_pad),
        grid=(nb,),
        in_specs=[
            pl.BlockSpec((bt, L), lambda i: (i, 0)),       # left   (pipelined)
            pl.BlockSpec((bt, R), lambda i: (i, 0)),       # right  (pipelined)
            pl.BlockSpec((R, cols), lambda i: (0, 0)),     # [U_big | W_r^T] (VMEM-resident)
            pl.BlockSpec((L, O_pad), lambda i: (0, 0)),    # W_l^T padded    (resident)
            pl.BlockSpec((1, O_pad), lambda i: (0, 0)),    # bias            (resident)
        ],
        out_specs=pl.BlockSpec((bt, O_pad), lambda i: (i, 0)),
        out_shape=jax.ShapeDtypeStruct((b_pad, O_pad), out_dtype),
        scratch_shapes=[pltpu.VMEM((bt, cols), jnp.float32)],
        compiler_params=pltpu.CompilerParams(
            dimension_semantics=("parallel",),
            vmem_limit_bytes=vmem_limit,
        ),
        cost_estimate=pl.CostEstimate(flops=int(flops), transcendentals=0,
                                      bytes_accessed=int(bytes_accessed)),
    )(left2, right2, a_mat, wl_t, bias2)

    out = out[:batch, :O]
    return out.reshape(left_size[:-1] + (O,))


def _xavier_uniform(key, shape):
    """PyTorch-style xavier_uniform_ (deterministic given key)."""
    if len(shape) == 2:
        fan_in, fan_out = shape[1], shape[0]
    else:
        receptive = int(np.prod(shape[2:]))
        fan_in = shape[1] * receptive
        fan_out = shape[0] * receptive
    bound = float(np.sqrt(6.0 / (fan_in + fan_out)))
    return jax.random.uniform(key, shape, jnp.float32, minval=-bound, maxval=bound)


def _reference(input_left, input_right, U, W_l, W_r, bias):
    left_size = input_left.shape
    O, L, R = U.shape
    batch = int(np.prod(left_size[:-1]))
    l = input_left.reshape(batch, L)
    r = input_right.reshape(batch, R)
    bil = jnp.einsum("bl,olr,br->bo", l, U, r)
    out = bil + l @ W_l.T + r @ W_r.T + bias
    return out.reshape(left_size[:-1] + (O,))


if __name__ == "__main__":
    # Small shapes consistent with the module: leading batch dims (2, 4),
    # left_features == right_features == 32, out_features == 16.
    left_features = 32
    right_features = 32
    out_features = 16
    leading = (2, 4)

    key = jax.random.PRNGKey(0)
    k_u, k_wl, k_wr, k_l, k_r = jax.random.split(key, 5)

    U = _xavier_uniform(k_u, (out_features, left_features, right_features))
    W_l = _xavier_uniform(k_wl, (out_features, left_features))
    W_r = _xavier_uniform(k_wr, (out_features, left_features))  # shape as declared in module
    bias = jnp.zeros((out_features,), jnp.float32)

    input_left = jax.random.normal(k_l, leading + (left_features,), jnp.float32)
    input_right = jax.random.normal(k_r, leading + (right_features,), jnp.float32)

    ref = _reference(input_left, input_right, U, W_l, W_r, bias)

    # f32 MXU-operand path: tight numerical check.
    out_f32 = bilinear_forward(input_left, input_right, U, W_l, W_r, bias,
                               compute_dtype=jnp.float32)
    out_f32 = jax.block_until_ready(out_f32)
    np.testing.assert_allclose(np.asarray(out_f32), np.asarray(ref),
                               rtol=1e-4, atol=1e-4)

    # Default path (bf16 MXU operands, f32 accumulation): looser check.
    out_bf16 = bilinear_forward(input_left, input_right, U, W_l, W_r, bias)
    out_bf16 = jax.block_until_ready(out_bf16)
    np.testing.assert_allclose(np.asarray(out_bf16), np.asarray(ref),
                               rtol=5e-2, atol=5e-2)

    print("KERNEL_OK")
</pallas_src>

<mosaic_0001>
module attributes {stable_mosaic.version = 11 : i64} {
  func.func @kernel(%arg0: i32, %arg1: memref<8x32xf32, #tpu.memory_space<vmem>>, %arg2: memref<8x32xf32, #tpu.memory_space<vmem>>, %arg3: memref<32x4224xf32, #tpu.memory_space<vmem>>, %arg4: memref<32x128xf32, #tpu.memory_space<vmem>>, %arg5: memref<1x128xf32, #tpu.memory_space<vmem>>, %arg6: memref<8x128xf32, #tpu.memory_space<vmem>>, %arg7: memref<8x4224xf32, #tpu.memory_space<vmem>>) attributes {dimension_semantics = [#tpu.dimension_semantics<parallel>], iteration_bounds = array<i64: 1>, scalar_prefetch = 0 : i64, scratch_operands = 1 : i64, tpu.core_type = #tpu.core_type<tc>, window_params = [{transform_indices = @transform_0, window_bounds = array<i64: 8, 32>}, {transform_indices = @transform_1, window_bounds = array<i64: 8, 32>}, {pipeline_mode = #tpu.pipeline_mode<synchronous>, transform_indices = @transform_2, window_bounds = array<i64: 32, 4224>}, {pipeline_mode = #tpu.pipeline_mode<synchronous>, transform_indices = @transform_3, window_bounds = array<i64: 32, 128>}, {pipeline_mode = #tpu.pipeline_mode<synchronous>, transform_indices = @transform_4, window_bounds = array<i64: 1, 128>}, {transform_indices = @transform_5, window_bounds = array<i64: 8, 128>}]} {
    %c0 = arith.constant 0 : index
    %c0_0 = arith.constant 0 : index
    %0 = vector.load %arg1[%c0, %c0_0] : memref<8x32xf32, #tpu.memory_space<vmem>>, vector<8x32xf32>
    %c0_1 = arith.constant 0 : index
    %c0_2 = arith.constant 0 : index
    %1 = vector.load %arg2[%c0_1, %c0_2] : memref<8x32xf32, #tpu.memory_space<vmem>>, vector<8x32xf32>
    %c0_3 = arith.constant 0 : index
    %c0_4 = arith.constant 0 : index
    %2 = vector.load %arg3[%c0_3, %c0_4] : memref<32x4224xf32, #tpu.memory_space<vmem>>, vector<32x4224xf32>
    %cst = arith.constant dense<0.000000e+00> : vector<8x4224xf32>
    %3 = tpu.matmul %1, %2, %cst {dimension_numbers = #tpu.dot_dimension_numbers<[1], [0], [0], [1], [0, 0, 1, 1], [], []>} : vector<8x32xf32>, vector<32x4224xf32>, vector<8x4224xf32> -> vector<8x4224xf32>
    %c0_5 = arith.constant 0 : index
    %c0_6 = arith.constant 0 : index
    %4 = vector.load %arg7[%c0_5, %c0_6] : memref<8x4224xf32, #tpu.memory_space<vmem>>, vector<8x4224xf32>
    tpu.vector_store %arg7[%c0_5, %c0_6], %3 {strides = array<i32>} : memref<8x4224xf32, #tpu.memory_space<vmem>>, vector<8x4224xf32>,
    %c0_7 = arith.constant 0 : index
    %c0_8 = arith.constant 0 : index
    %5 = vector.load %arg4[%c0_7, %c0_8] : memref<32x128xf32, #tpu.memory_space<vmem>>, vector<32x128xf32>
    %cst_9 = arith.constant dense<0.000000e+00> : vector<8x128xf32>
    %6 = tpu.matmul %0, %5, %cst_9 {dimension_numbers = #tpu.dot_dimension_numbers<[1], [0], [0], [1], [0, 0, 1, 1], [], []>} : vector<8x32xf32>, vector<32x128xf32>, vector<8x128xf32> -> vector<8x128xf32>
    %c0_10 = arith.constant 0 : index
    %c4096 = arith.constant 4096 : index
    %7 = vector.load %arg7[%c0_10, %c4096] : memref<8x4224xf32, #tpu.memory_space<vmem>>, vector<8x128xf32>
    %8 = arith.addf %6, %7 : vector<8x128xf32>
    %c0_11 = arith.constant 0 : index
    %c0_12 = arith.constant 0 : index
    %9 = vector.load %arg5[%c0_11, %c0_12] : memref<1x128xf32, #tpu.memory_space<vmem>>, vector<1x128xf32>
    %10 = vector.broadcast %9 : vector<1x128xf32> to vector<8x128xf32>
    %11 = arith.addf %8, %10 : vector<8x128xf32>
    %12 = vector.extract_strided_slice %0 {offsets = [0, 0], sizes = [8, 1], strides = [1, 1]} : vector<8x32xf32> to vector<8x1xf32>
    %c0_13 = arith.constant 0 : index
    %c0_14 = arith.constant 0 : index
    %13 = vector.load %arg7[%c0_13, %c0_14] : memref<8x4224xf32, #tpu.memory_space<vmem>>, vector<8x128xf32>
    %14 = vector.broadcast %12 : vector<8x1xf32> to vector<8x128xf32>
    %15 = arith.mulf %14, %13 : vector<8x128xf32>
    %16 = arith.addf %11, %15 : vector<8x128xf32>
    %17 = vector.extract_strided_slice %0 {offsets = [0, 1], sizes = [8, 1], strides = [1, 1]} : vector<8x32xf32> to vector<8x1xf32>
    %c0_15 = arith.constant 0 : index
    %c128 = arith.constant 128 : index
    %18 = vector.load %arg7[%c0_15, %c128] : memref<8x4224xf32, #tpu.memory_space<vmem>>, vector<8x128xf32>
    %19 = vector.broadcast %17 : vector<8x1xf32> to vector<8x128xf32>
    %20 = arith.mulf %19, %18 : vector<8x128xf32>
    %21 = arith.addf %16, %20 : vector<8x128xf32>
    %22 = vector.extract_strided_slice %0 {offsets = [0, 2], sizes = [8, 1], strides = [1, 1]} : vector<8x32xf32> to vector<8x1xf32>
    %c0_16 = arith.constant 0 : index
    %c256 = arith.constant 256 : index
    %23 = vector.load %arg7[%c0_16, %c256] : memref<8x4224xf32, #tpu.memory_space<vmem>>, vector<8x128xf32>
    %24 = vector.broadcast %22 : vector<8x1xf32> to vector<8x128xf32>
    %25 = arith.mulf %24, %23 : vector<8x128xf32>
    %26 = arith.addf %21, %25 : vector<8x128xf32>
    %27 = vector.extract_strided_slice %0 {offsets = [0, 3], sizes = [8, 1], strides = [1, 1]} : vector<8x32xf32> to vector<8x1xf32>
    %c0_17 = arith.constant 0 : index
    %c384 = arith.constant 384 : index
    %28 = vector.load %arg7[%c0_17, %c384] : memref<8x4224xf32, #tpu.memory_space<vmem>>, vector<8x128xf32>
    %29 = vector.broadcast %27 : vector<8x1xf32> to vector<8x128xf32>
    %30 = arith.mulf %29, %28 : vector<8x128xf32>
    %31 = arith.addf %26, %30 : vector<8x128xf32>
    %32 = vector.extract_strided_slice %0 {offsets = [0, 4], sizes = [8, 1], strides = [1, 1]} : vector<8x32xf32> to vector<8x1xf32>
    %c0_18 = arith.constant 0 : index
    %c512 = arith.constant 512 : index
    %33 = vector.load %arg7[%c0_18, %c512] : memref<8x4224xf32, #tpu.memory_space<vmem>>, vector<8x128xf32>
    %34 = vector.broadcast %32 : vector<8x1xf32> to vector<8x128xf32>
    %35 = arith.mulf %34, %33 : vector<8x128xf32>
    %36 = arith.addf %31, %35 : vector<8x128xf32>
    %37 = vector.extract_strided_slice %0 {offsets = [0, 5], sizes = [8, 1], strides = [1, 1]} : vector<8x32xf32> to vector<8x1xf32>
    %c0_19 = arith.constant 0 : index
    %c640 = arith.constant 640 : index
    %38 = vector.load %arg7[%c0_19, %c640] : memref<8x4224xf32, #tpu.memory_space<vmem>>, vector<8x128xf32>
    %39 = vector.broadcast %37 : vector<8x1xf32> to vector<8x128xf32>
    %40 = arith.mulf %39, %38 : vector<8x128xf32>
    %41 = arith.addf %36, %40 : vector<8x128xf32>
    %42 = vector.extract_strided_slice %0 {offsets = [0, 6], sizes = [8, 1], strides = [1, 1]} : vector<8x32xf32> to vector<8x1xf32>
    %c0_20 = arith.constant 0 : index
    %c768 = arith.constant 768 : index
    %43 = vector.load %arg7[%c0_20, %c768] : memref<8x4224xf32, #tpu.memory_space<vmem>>, vector<8x128xf32>
    %44 = vector.broadcast %42 : vector<8x1xf32> to vector<8x128xf32>
    %45 = arith.mulf %44, %43 : vector<8x128xf32>
    %46 = arith.addf %41, %45 : vector<8x128xf32>
    %47 = vector.extract_strided_slice %0 {offsets = [0, 7], sizes = [8, 1], strides = [1, 1]} : vector<8x32xf32> to vector<8x1xf32>
    %c0_21 = arith.constant 0 : index
    %c896 = arith.constant 896 : index
    %48 = vector.load %arg7[%c0_21, %c896] : memref<8x4224xf32, #tpu.memory_space<vmem>>, vector<8x128xf32>
    %49 = vector.broadcast %47 : vector<8x1xf32> to vector<8x128xf32>
    %50 = arith.mulf %49, %48 : vector<8x128xf32>
    %51 = arith.addf %46, %50 : vector<8x128xf32>
    %52 = vector.extract_strided_slice %0 {offsets = [0, 8], sizes = [8, 1], strides = [1, 1]} : vector<8x32xf32> to vector<8x1xf32>
    %c0_22 = arith.constant 0 : index
    %c1024 = arith.constant 1024 : index
    %53 = vector.load %arg7[%c0_22, %c1024] : memref<8x4224xf32, #tpu.memory_space<vmem>>, vector<8x128xf32>
    %54 = vector.broadcast %52 : vector<8x1xf32> to vector<8x128xf32>
    %55 = arith.mulf %54, %53 : vector<8x128xf32>
    %56 = arith.addf %51, %55 : vector<8x128xf32>
    %57 = vector.extract_strided_slice %0 {offsets = [0, 9], sizes = [8, 1], strides = [1, 1]} : vector<8x32xf32> to vector<8x1xf32>
    %c0_23 = arith.constant 0 : index
    %c1152 = arith.constant 1152 : index
    %58 = vector.load %arg7[%c0_23, %c1152] : memref<8x4224xf32, #tpu.memory_space<vmem>>, vector<8x128xf32>
    %59 = vector.broadcast %57 : vector<8x1xf32> to vector<8x128xf32>
    %60 = arith.mulf %59, %58 : vector<8x128xf32>
    %61 = arith.addf %56, %60 : vector<8x128xf32>
    %62 = vector.extract_strided_slice %0 {offsets = [0, 10], sizes = [8, 1], strides = [1, 1]} : vector<8x32xf32> to vector<8x1xf32>
    %c0_24 = arith.constant 0 : index
    %c1280 = arith.constant 1280 : index
    %63 = vector.load %arg7[%c0_24, %c1280] : memref<8x4224xf32, #tpu.memory_space<vmem>>, vector<8x128xf32>
    %64 = vector.broadcast %62 : vector<8x1xf32> to vector<8x128xf32>
    %65 = arith.mulf %64, %63 : vector<8x128xf32>
    %66 = arith.addf %61, %65 : vector<8x128xf32>
    %67 = vector.extract_strided_slice %0 {offsets = [0, 11], sizes = [8, 1], strides = [1, 1]} : vector<8x32xf32> to vector<8x1xf32>
    %c0_25 = arith.constant 0 : index
    %c1408 = arith.constant 1408 : index
    %68 = vector.load %arg7[%c0_25, %c1408] : memref<8x4224xf32, #tpu.memory_space<vmem>>, vector<8x128xf32>
    %69 = vector.broadcast %67 : vector<8x1xf32> to vector<8x128xf32>
    %70 = arith.mulf %69, %68 : vector<8x128xf32>
    %71 = arith.addf %66, %70 : vector<8x128xf32>
    %72 = vector.extract_strided_slice %0 {offsets = [0, 12], sizes = [8, 1], strides = [1, 1]} : vector<8x32xf32> to vector<8x1xf32>
    %c0_26 = arith.constant 0 : index
    %c1536 = arith.constant 1536 : index
    %73 = vector.load %arg7[%c0_26, %c1536] : memref<8x4224xf32, #tpu.memory_space<vmem>>, vector<8x128xf32>
    %74 = vector.broadcast %72 : vector<8x1xf32> to vector<8x128xf32>
    %75 = arith.mulf %74, %73 : vector<8x128xf32>
    %76 = arith.addf %71, %75 : vector<8x128xf32>
    %77 = vector.extract_strided_slice %0 {offsets = [0, 13], sizes = [8, 1], strides = [1, 1]} : vector<8x32xf32> to vector<8x1xf32>
    %c0_27 = arith.constant 0 : index
    %c1664 = arith.constant 1664 : index
    %78 = vector.load %arg7[%c0_27, %c1664] : memref<8x4224xf32, #tpu.memory_space<vmem>>, vector<8x128xf32>
    %79 = vector.broadcast %77 : vector<8x1xf32> to vector<8x128xf32>
    %80 = arith.mulf %79, %78 : vector<8x128xf32>
    %81 = arith.addf %76, %80 : vector<8x128xf32>
    %82 = vector.extract_strided_slice %0 {offsets = [0, 14], sizes = [8, 1], strides = [1, 1]} : vector<8x32xf32> to vector<8x1xf32>
    %c0_28 = arith.constant 0 : index
    %c1792 = arith.constant 1792 : index
    %83 = vector.load %arg7[%c0_28, %c1792] : memref<8x4224xf32, #tpu.memory_space<vmem>>, vector<8x128xf32>
    %84 = vector.broadcast %82 : vector<8x1xf32> to vector<8x128xf32>
    %85 = arith.mulf %84, %83 : vector<8x128xf32>
    %86 = arith.addf %81, %85 : vector<8x128xf32>
    %87 = vector.extract_strided_slice %0 {offsets = [0, 15], sizes = [8, 1], strides = [1, 1]} : vector<8x32xf32> to vector<8x1xf32>
    %c0_29 = arith.constant 0 : index
    %c1920 = arith.constant 1920 : index
    %88 = vector.load %arg7[%c0_29, %c1920] : memref<8x4224xf32, #tpu.memory_space<vmem>>, vector<8x128xf32>
    %89 = vector.broadcast %87 : vector<8x1xf32> to vector<8x128xf32>
    %90 = arith.mulf %89, %88 : vector<8x128xf32>
    %91 = arith.addf %86, %90 : vector<8x128xf32>
    %92 = vector.extract_strided_slice %0 {offsets = [0, 16], sizes = [8, 1], strides = [1, 1]} : vector<8x32xf32> to vector<8x1xf32>
    %c0_30 = arith.constant 0 : index
    %c2048 = arith.constant 2048 : index
    %93 = vector.load %arg7[%c0_30, %c2048] : memref<8x4224xf32, #tpu.memory_space<vmem>>, vector<8x128xf32>
    %94 = vector.broadcast %92 : vector<8x1xf32> to vector<8x128xf32>
    %95 = arith.mulf %94, %93 : vector<8x128xf32>
    %96 = arith.addf %91, %95 : vector<8x128xf32>
    %97 = vector.extract_strided_slice %0 {offsets = [0, 17], sizes = [8, 1], strides = [1, 1]} : vector<8x32xf32> to vector<8x1xf32>
    %c0_31 = arith.constant 0 : index
    %c2176 = arith.constant 2176 : index
    %98 = vector.load %arg7[%c0_31, %c2176] : memref<8x4224xf32, #tpu.memory_space<vmem>>, vector<8x128xf32>
    %99 = vector.broadcast %97 : vector<8x1xf32> to vector<8x128xf32>
    %100 = arith.mulf %99, %98 : vector<8x128xf32>
    %101 = arith.addf %96, %100 : vector<8x128xf32>
    %102 = vector.extract_strided_slice %0 {offsets = [0, 18], sizes = [8, 1], strides = [1, 1]} : vector<8x32xf32> to vector<8x1xf32>
    %c0_32 = arith.constant 0 : index
    %c2304 = arith.constant 2304 : index
    %103 = vector.load %arg7[%c0_32, %c2304] : memref<8x4224xf32, #tpu.memory_space<vmem>>, vector<8x128xf32>
    %104 = vector.broadcast %102 : vector<8x1xf32> to vector<8x128xf32>
    %105 = arith.mulf %104, %103 : vector<8x128xf32>
    %106 = arith.addf %101, %105 : vector<8x128xf32>
    %107 = vector.extract_strided_slice %0 {offsets = [0, 19], sizes = [8, 1], strides = [1, 1]} : vector<8x32xf32> to vector<8x1xf32>
    %c0_33 = arith.constant 0 : index
    %c2432 = arith.constant 2432 : index
    %108 = vector.load %arg7[%c0_33, %c2432] : memref<8x4224xf32, #tpu.memory_space<vmem>>, vector<8x128xf32>
    %109 = vector.broadcast %107 : vector<8x1xf32> to vector<8x128xf32>
    %110 = arith.mulf %109, %108 : vector<8x128xf32>
    %111 = arith.addf %106, %110 : vector<8x128xf32>
    %112 = vector.extract_strided_slice %0 {offsets = [0, 20], sizes = [8, 1], strides = [1, 1]} : vector<8x32xf32> to vector<8x1xf32>
    %c0_34 = arith.constant 0 : index
    %c2560 = arith.constant 2560 : index
    %113 = vector.load %arg7[%c0_34, %c2560] : memref<8x4224xf32, #tpu.memory_space<vmem>>, vector<8x128xf32>
    %114 = vector.broadcast %112 : vector<8x1xf32> to vector<8x128xf32>
    %115 = arith.mulf %114, %113 : vector<8x128xf32>
    %116 = arith.addf %111, %115 : vector<8x128xf32>
    %117 = vector.extract_strided_slice %0 {offsets = [0, 21], sizes = [8, 1], strides = [1, 1]} : vector<8x32xf32> to vector<8x1xf32>
    %c0_35 = arith.constant 0 : index
    %c2688 = arith.constant 2688 : index
    %118 = vector.load %arg7[%c0_35, %c2688] : memref<8x4224xf32, #tpu.memory_space<vmem>>, vector<8x128xf32>
    %119 = vector.broadcast %117 : vector<8x1xf32> to vector<8x128xf32>
    %120 = arith.mulf %119, %118 : vector<8x128xf32>
    %121 = arith.addf %116, %120 : vector<8x128xf32>
    %122 = vector.extract_strided_slice %0 {offsets = [0, 22], sizes = [8, 1], strides = [1, 1]} : vector<8x32xf32> to vector<8x1xf32>
    %c0_36 = arith.constant 0 : index
    %c2816 = arith.constant 2816 : index
    %123 = vector.load %arg7[%c0_36, %c2816] : memref<8x4224xf32, #tpu.memory_space<vmem>>, vector<8x128xf32>
    %124 = vector.broadcast %122 : vector<8x1xf32> to vector<8x128xf32>
    %125 = arith.mulf %124, %123 : vector<8x128xf32>
    %126 = arith.addf %121, %125 : vector<8x128xf32>
    %127 = vector.extract_strided_slice %0 {offsets = [0, 23], sizes = [8, 1], strides = [1, 1]} : vector<8x32xf32> to vector<8x1xf32>
    %c0_37 = arith.constant 0 : index
    %c2944 = arith.constant 2944 : index
    %128 = vector.load %arg7[%c0_37, %c2944] : memref<8x4224xf32, #tpu.memory_space<vmem>>, vector<8x128xf32>
    %129 = vector.broadcast %127 : vector<8x1xf32> to vector<8x128xf32>
    %130 = arith.mulf %129, %128 : vector<8x128xf32>
    %131 = arith.addf %126, %130 : vector<8x128xf32>
    %132 = vector.extract_strided_slice %0 {offsets = [0, 24], sizes = [8, 1], strides = [1, 1]} : vector<8x32xf32> to vector<8x1xf32>
    %c0_38 = arith.constant 0 : index
    %c3072 = arith.constant 3072 : index
    %133 = vector.load %arg7[%c0_38, %c3072] : memref<8x4224xf32, #tpu.memory_space<vmem>>, vector<8x128xf32>
    %134 = vector.broadcast %132 : vector<8x1xf32> to vector<8x128xf32>
    %135 = arith.mulf %134, %133 : vector<8x128xf32>
    %136 = arith.addf %131, %135 : vector<8x128xf32>
    %137 = vector.extract_strided_slice %0 {offsets = [0, 25], sizes = [8, 1], strides = [1, 1]} : vector<8x32xf32> to vector<8x1xf32>
    %c0_39 = arith.constant 0 : index
    %c3200 = arith.constant 3200 : index
    %138 = vector.load %arg7[%c0_39, %c3200] : memref<8x4224xf32, #tpu.memory_space<vmem>>, vector<8x128xf32>
    %139 = vector.broadcast %137 : vector<8x1xf32> to vector<8x128xf32>
    %140 = arith.mulf %139, %138 : vector<8x128xf32>
    %141 = arith.addf %136, %140 : vector<8x128xf32>
    %142 = vector.extract_strided_slice %0 {offsets = [0, 26], sizes = [8, 1], strides = [1, 1]} : vector<8x32xf32> to vector<8x1xf32>
    %c0_40 = arith.constant 0 : index
    %c3328 = arith.constant 3328 : index
    %143 = vector.load %arg7[%c0_40, %c3328] : memref<8x4224xf32, #tpu.memory_space<vmem>>, vector<8x128xf32>
    %144 = vector.broadcast %142 : vector<8x1xf32> to vector<8x128xf32>
    %145 = arith.mulf %144, %143 : vector<8x128xf32>
    %146 = arith.addf %141, %145 : vector<8x128xf32>
    %147 = vector.extract_strided_slice %0 {offsets = [0, 27], sizes = [8, 1], strides = [1, 1]} : vector<8x32xf32> to vector<8x1xf32>
    %c0_41 = arith.constant 0 : index
    %c3456 = arith.constant 3456 : index
    %148 = vector.load %arg7[%c0_41, %c3456] : memref<8x4224xf32, #tpu.memory_space<vmem>>, vector<8x128xf32>
    %149 = vector.broadcast %147 : vector<8x1xf32> to vector<8x128xf32>
    %150 = arith.mulf %149, %148 : vector<8x128xf32>
    %151 = arith.addf %146, %150 : vector<8x128xf32>
    %152 = vector.extract_strided_slice %0 {offsets = [0, 28], sizes = [8, 1], strides = [1, 1]} : vector<8x32xf32> to vector<8x1xf32>
    %c0_42 = arith.constant 0 : index
    %c3584 = arith.constant 3584 : index
    %153 = vector.load %arg7[%c0_42, %c3584] : memref<8x4224xf32, #tpu.memory_space<vmem>>, vector<8x128xf32>
    %154 = vector.broadcast %152 : vector<8x1xf32> to vector<8x128xf32>
    %155 = arith.mulf %154, %153 : vector<8x128xf32>
    %156 = arith.addf %151, %155 : vector<8x128xf32>
    %157 = vector.extract_strided_slice %0 {offsets = [0, 29], sizes = [8, 1], strides = [1, 1]} : vector<8x32xf32> to vector<8x1xf32>
    %c0_43 = arith.constant 0 : index
    %c3712 = arith.constant 3712 : index
    %158 = vector.load %arg7[%c0_43, %c3712] : memref<8x4224xf32, #tpu.memory_space<vmem>>, vector<8x128xf32>
    %159 = vector.broadcast %157 : vector<8x1xf32> to vector<8x128xf32>
    %160 = arith.mulf %159, %158 : vector<8x128xf32>
    %161 = arith.addf %156, %160 : vector<8x128xf32>
    %162 = vector.extract_strided_slice %0 {offsets = [0, 30], sizes = [8, 1], strides = [1, 1]} : vector<8x32xf32> to vector<8x1xf32>
    %c0_44 = arith.constant 0 : index
    %c3840 = arith.constant 3840 : index
    %163 = vector.load %arg7[%c0_44, %c3840] : memref<8x4224xf32, #tpu.memory_space<vmem>>, vector<8x128xf32>
    %164 = vector.broadcast %162 : vector<8x1xf32> to vector<8x128xf32>
    %165 = arith.mulf %164, %163 : vector<8x128xf32>
    %166 = arith.addf %161, %165 : vector<8x128xf32>
    %167 = vector.extract_strided_slice %0 {offsets = [0, 31], sizes = [8, 1], strides = [1, 1]} : vector<8x32xf32> to vector<8x1xf32>
    %c0_45 = arith.constant 0 : index
    %c3968 = arith.constant 3968 : index
    %168 = vector.load %arg7[%c0_45, %c3968] : memref<8x4224xf32, #tpu.memory_space<vmem>>, vector<8x128xf32>
    %169 = vector.broadcast %167 : vector<8x1xf32> to vector<8x128xf32>
    %170 = arith.mulf %169, %168 : vector<8x128xf32>
    %171 = arith.addf %166, %170 : vector<8x128xf32>
    %c0_46 = arith.constant 0 : index
    %c0_47 = arith.constant 0 : index
    %172 = vector.load %arg6[%c0_46, %c0_47] : memref<8x128xf32, #tpu.memory_space<vmem>>, vector<8x128xf32>
    tpu.vector_store %arg6[%c0_46, %c0_47], %171 {strides = array<i32>} : memref<8x128xf32, #tpu.memory_space<vmem>>, vector<8x128xf32>,
    return
  }
  func.func @transform_0(%arg0: i32) -> (i32, i32) {
    %c0_i32 = arith.constant 0 : i32
    %c0_i32_0 = arith.constant 0 : i32
    return %arg0, %c0_i32 : i32, i32
  }
  func.func @transform_1(%arg0: i32) -> (i32, i32) {
    %c0_i32 = arith.constant 0 : i32
    %c0_i32_0 = arith.constant 0 : i32
    return %arg0, %c0_i32 : i32, i32
  }
  func.func @transform_2(%arg0: i32) -> (i32, i32) {
    %c0_i32 = arith.constant 0 : i32
    %c0_i32_0 = arith.constant 0 : i32
    %c0_i32_1 = arith.constant 0 : i32
    return %c0_i32, %c0_i32_0 : i32, i32
  }
  func.func @transform_3(%arg0: i32) -> (i32, i32) {
    %c0_i32 = arith.constant 0 : i32
    %c0_i32_0 = arith.constant 0 : i32
    %c0_i32_1 = arith.constant 0 : i32
    return %c0_i32, %c0_i32_0 : i32, i32
  }
  func.func @transform_4(%arg0: i32) -> (i32, i32) {
    %c0_i32 = arith.constant 0 : i32
    %c0_i32_0 = arith.constant 0 : i32
    %c0_i32_1 = arith.constant 0 : i32
    return %c0_i32, %c0_i32_0 : i32, i32
  }
  func.func @transform_5(%arg0: i32) -> (i32, i32) {
    %c0_i32 = arith.constant 0 : i32
    %c0_i32_0 = arith.constant 0 : i32
    return %arg0, %c0_i32 : i32, i32
  }
}

</mosaic_0001>

<llo_original>
// kernel: tpu_custom_call.1
$region0: #{tpu_custom_call.1}
  #allocation0 [shape = 'u32[]', space=smem, size = 0x4, offset = 0x4, fixed_abs, tag = 'smem constant byte address 0x4 - core index']
  #allocation1 [shape = 'u32[144,128]{1,0:T(1,128)}', space=vmem, size = 0x12000, scoped, tag = 'internal scratch']
  #allocation2 [shape = 'f32[8,4224]{1,0:T(8,128)}', space=vmem, size = 0x21000, scoped, tag = 'scratch operand']
  %s0 = inlined_call_operand.hbm [shape: f32[8,32], index: 0, kind: input, shape index: {}]
  %s1 = inlined_call_operand.hbm [shape: f32[8,32], index: 1, kind: input, shape index: {}]
  %s2 = inlined_call_operand.hbm [shape: f32[32,4224], index: 2, kind: input, shape index: {}]
  %s3 = inlined_call_operand.hbm [shape: f32[32,128], index: 3, kind: input, shape index: {}]
  %s4 = inlined_call_operand.vmem [shape: f32[1,128], index: 4, kind: input, shape index: {}]
  %s5 = inlined_call_operand.hbm [shape: f32[8,128], index: 5, kind: output, shape index: {}]
  %s6 = sld [smem:[#allocation0]]
  $region46: #{tpu_custom_call.1} parent=0
    _
  %s8 = ssub.s32 1, %s6
  %s9 = scalar_select 0, %s8, %s6
  $region1: #{tpu_custom_call.1} parent=0
    #allocation3 [shape = 'u8[4096]{0}', space=vmem, size = 0x1000, scoped, tag = 'input window, operand 0, single buffered']
    #allocation4 [shape = 's32[1]{0}', space=sflag, size = 0x4, scoped, tag = 'scoped memory for tpu_custom_call.1']
    #allocation5 [shape = 's32[1]{0}', space=sflag, size = 0x4, scoped, tag = 'scoped memory for tpu_custom_call.1']
    #allocation6 [shape = 'u8[4096]{0}', space=vmem, size = 0x1000, scoped, tag = 'input window, operand 1, single buffered']
    #allocation7 [shape = 's32[1]{0}', space=sflag, size = 0x4, scoped, tag = 'scoped memory for tpu_custom_call.1']
    #allocation8 [shape = 'u8[540672]{0}', space=vmem, size = 0x84000, scoped, tag = 'input window, operand 2, single buffered']
    #allocation9 [shape = 'u8[16384]{0}', space=vmem, size = 0x4000, scoped, tag = 'input window, operand 3, single buffered']
    #allocation10 [shape = 's32[1]{0}', space=sflag, size = 0x4, scoped, tag = 'scoped memory for tpu_custom_call.1']
    #allocation11 [shape = 'u8[4096]{0}', space=vmem, size = 0x1000, scoped, tag = 'output window, operand 0, single buffered']
    %10 = vsyncpa [#allocation4], 0
    %11 = vsyncpa [#allocation7], 0
    %12 = vsyncpa [#allocation10], 0
    %13 = vsyncpa [#allocation5], 0
    // Predicated region
    $region2: #{tpu_custom_call.1} parent=1 // pred_check
      _
    $region3: #{tpu_custom_call.1} parent=1 // pred_check_branch
      %15 = sbr.rel (0) target = $region5
    $region4: #{tpu_custom_call.1} parent=1 // pred_region
      %s17 = ssub.s32 128, 128
      %18 = vsyncadd [#allocation4], %s17
      %s20 = sshll.u32 [#allocation3], 4
      %s21 = int_to_ptr.vmem [resolvable:$true] %s20
      %23 = dma.hbm_to_vmem [thread:$0]  %s0, 128, %s21, [#allocation4]
    $region5: #{tpu_custom_call.1} parent=1 // pred_fallthru
      _
    // Predicated region
    $region6: #{tpu_custom_call.1} parent=1 // pred_check
      _
    $region7: #{tpu_custom_call.1} parent=1 // pred_check_branch
      %25 = sbr.rel (0) target = $region9
    $region8: #{tpu_custom_call.1} parent=1 // pred_region
      %s27 = ssub.s32 128, 128
      %28 = vsyncadd [#allocation7], %s27
      %s30 = sshll.u32 [#allocation6], 4
      %s31 = int_to_ptr.vmem [resolvable:$true] %s30
      %33 = dma.hbm_to_vmem [thread:$0]  %s1, 128, %s31, [#allocation7]
    $region9: #{tpu_custom_call.1} parent=1 // pred_fallthru
      _
    // Predicated region
    $region10: #{tpu_custom_call.1} parent=1 // pred_check
      _
    $region11: #{tpu_custom_call.1} parent=1 // pred_check_branch
      %35 = sbr.rel (0) target = $region13
    $region12: #{tpu_custom_call.1} parent=1 // pred_region
      %s37 = ssub.s32 16896, 16896
      %38 = vsyncadd [#allocation7], %s37
      %s39 = sshll.u32 [#allocation8], 4
      %s40 = int_to_ptr.vmem [resolvable:$true] %s39
      %45 = dma.hbm_to_vmem [thread:$0]  %s2, 16896, %s40, [#allocation7], 4224, 4224, 264
    $region13: #{tpu_custom_call.1} parent=1 // pred_fallthru
      _
    // Predicated region
    $region14: #{tpu_custom_call.1} parent=1 // pred_check
      _
    $region15: #{tpu_custom_call.1} parent=1 // pred_check_branch
      %47 = sbr.rel (0) target = $region17
    $region16: #{tpu_custom_call.1} parent=1 // pred_region
      %s49 = ssub.s32 512, 512
      %50 = vsyncadd [#allocation10], %s49
      %s51 = sshll.u32 [#allocation9], 4
      %s52 = int_to_ptr.vmem [resolvable:$true] %s51
      %57 = dma.hbm_to_vmem [thread:$0]  %s3, 512, %s52, [#allocation10], 128, 128, 8
    $region17: #{tpu_custom_call.1} parent=1 // pred_fallthru
      _
    // Predicated region
    $region18: #{tpu_custom_call.1} parent=1 // pred_check
      _
    $region19: #{tpu_custom_call.1} parent=1 // pred_check_branch
      %59 = sbr.rel (0) target = $region21
    $region20: #{tpu_custom_call.1} parent=1 // pred_region
      _
    $region21: #{tpu_custom_call.1} parent=1 // pred_fallthru
      _
    // Predicated region
    $region22: #{tpu_custom_call.1} parent=1 // pred_check
      _
    $region23: #{tpu_custom_call.1} parent=1 // pred_check_branch
      %61 = sbr.rel (0) target = $region25
    $region24: #{tpu_custom_call.1} parent=1 // pred_region
      %62 = dma.done [#allocation4], 128
    $region25: #{tpu_custom_call.1} parent=1 // pred_fallthru
      _
    // Predicated region
    $region26: #{tpu_custom_call.1} parent=1 // pred_check
      _
    $region27: #{tpu_custom_call.1} parent=1 // pred_check_branch
      %64 = sbr.rel (0) target = $region29
    $region28: #{tpu_custom_call.1} parent=1 // pred_region
      %65 = dma.done [#allocation7], 128
    $region29: #{tpu_custom_call.1} parent=1 // pred_fallthru
      _
    // Predicated region
    $region30: #{tpu_custom_call.1} parent=1 // pred_check
      _
    $region31: #{tpu_custom_call.1} parent=1 // pred_check_branch
      %67 = sbr.rel (0) target = $region33
    $region32: #{tpu_custom_call.1} parent=1 // pred_region
      %68 = dma.done [#allocation7], 16896
    $region33: #{tpu_custom_call.1} parent=1 // pred_fallthru
      _
    // Predicated region
    $region34: #{tpu_custom_call.1} parent=1 // pred_check
      _
    $region35: #{tpu_custom_call.1} parent=1 // pred_check_branch
      %70 = sbr.rel (0) target = $region37
    $region36: #{tpu_custom_call.1} parent=1 // pred_region
      %71 = dma.done [#allocation10], 512
    $region37: #{tpu_custom_call.1} parent=1 // pred_fallthru
      _
    %v72 = vld [vmem:[#allocation3] sm:$0xff]
    %v73 = vld [vmem:[#allocation6] sm:$0xff]
    %v74 = vld [vmem:[#allocation8] sm:$0xff]
    %v75 = vld [vmem:[#allocation8 + $0x8] sm:$0xff]
    %v76 = vld [vmem:[#allocation8 + $0x10] sm:$0xff]
    %v77 = vld [vmem:[#allocation8 + $0x18] sm:$0xff]
    %v78 = vld [vmem:[#allocation8 + $0x20] sm:$0xff]
    %v79 = vld [vmem:[#allocation8 + $0x28] sm:$0xff]
    %v80 = vld [vmem:[#allocation8 + $0x30] sm:$0xff]
    %v81 = vld [vmem:[#allocation8 + $0x38] sm:$0xff]
    %v82 = vld [vmem:[#allocation8 + $0x40] sm:$0xff]
    %v83 = vld [vmem:[#allocation8 + $0x48] sm:$0xff]
    %v84 = vld [vmem:[#allocation8 + $0x50] sm:$0xff]
    %v85 = vld [vmem:[#allocation8 + $0x58] sm:$0xff]
    %v86 = vld [vmem:[#allocation8 + $0x60] sm:$0xff]
    %v87 = vld [vmem:[#allocation8 + $0x68] sm:$0xff]
    %v88 = vld [vmem:[#allocation8 + $0x70] sm:$0xff]
    %v89 = vld [vmem:[#allocation8 + $0x78] sm:$0xff]
    %v90 = vld [vmem:[#allocation8 + $0x80] sm:$0xff]
    %v91 = vld [vmem:[#allocation8 + $0x88] sm:$0xff]
    %v92 = vld [vmem:[#allocation8 + $0x90] sm:$0xff]
    %v93 = vld [vmem:[#allocation8 + $0x98] sm:$0xff]
    %v94 = vld [vmem:[#allocation8 + $0xa0] sm:$0xff]
    %v95 = vld [vmem:[#allocation8 + $0xa8] sm:$0xff]
    %v96 = vld [vmem:[#allocation8 + $0xb0] sm:$0xff]
    %v97 = vld [vmem:[#allocation8 + $0xb8] sm:$0xff]
    %v98 = vld [vmem:[#allocation8 + $0xc0] sm:$0xff]
    %v99 = vld [vmem:[#allocation8 + $0xc8] sm:$0xff]
    %v100 = vld [vmem:[#allocation8 + $0xd0] sm:$0xff]
    %v101 = vld [vmem:[#allocation8 + $0xd8] sm:$0xff]
    %v102 = vld [vmem:[#allocation8 + $0xe0] sm:$0xff]
    %v103 = vld [vmem:[#allocation8 + $0xe8] sm:$0xff]
    %v104 = vld [vmem:[#allocation8 + $0xf0] sm:$0xff]
    %v105 = vld [vmem:[#allocation8 + $0xf8] sm:$0xff]
    %v106 = vld [vmem:[#allocation8 + $0x100] sm:$0xff]
    %v107 = vld [vmem:[#allocation8 + $0x108] sm:$0xff]
    %v108 = vld [vmem:[#allocation8 + $0x110] sm:$0xff]
    %v109 = vld [vmem:[#allocation8 + $0x118] sm:$0xff]
    %v110 = vld [vmem:[#allocation8 + $0x120] sm:$0xff]
    %v111 = vld [vmem:[#allocation8 + $0x128] sm:$0xff]
    %v112 = vld [vmem:[#allocation8 + $0x130] sm:$0xff]
    %v113 = vld [vmem:[#allocation8 + $0x138] sm:$0xff]
    %v114 = vld [vmem:[#allocation8 + $0x140] sm:$0xff]
    %v115 = vld [vmem:[#allocation8 + $0x148] sm:$0xff]
    %v116 = vld [vmem:[#allocation8 + $0x150] sm:$0xff]
    %v117 = vld [vmem:[#allocation8 + $0x158] sm:$0xff]
    %v118 = vld [vmem:[#allocation8 + $0x160] sm:$0xff]
    %v119 = vld [vmem:[#allocation8 + $0x168] sm:$0xff]
    %v120 = vld [vmem:[#allocation8 + $0x170] sm:$0xff]
    %v121 = vld [vmem:[#allocation8 + $0x178] sm:$0xff]
    %v122 = vld [vmem:[#allocation8 + $0x180] sm:$0xff]
    %v123 = vld [vmem:[#allocation8 + $0x188] sm:$0xff]
    %v124 = vld [vmem:[#allocation8 + $0x190] sm:$0xff]
    %v125 = vld [vmem:[#allocation8 + $0x198] sm:$0xff]
    %v126 = vld [vmem:[#allocation8 + $0x1a0] sm:$0xff]
    %v127 = vld [vmem:[#allocation8 + $0x1a8] sm:$0xff]
    %v128 = vld [vmem:[#allocation8 + $0x1b0] sm:$0xff]
    %v129 = vld [vmem:[#allocation8 + $0x1b8] sm:$0xff]
    %v130 = vld [vmem:[#allocation8 + $0x1c0] sm:$0xff]
    %v131 = vld [vmem:[#allocation8 + $0x1c8] sm:$0xff]
    %v132 = vld [vmem:[#allocation8 + $0x1d0] sm:$0xff]
    %v133 = vld [vmem:[#allocation8 + $0x1d8] sm:$0xff]
    %v134 = vld [vmem:[#allocation8 + $0x1e0] sm:$0xff]
    %v135 = vld [vmem:[#allocation8 + $0x1e8] sm:$0xff]
    %v136 = vld [vmem:[#allocation8 + $0x1f0] sm:$0xff]
    %v137 = vld [vmem:[#allocation8 + $0x1f8] sm:$0xff]
    %v138 = vld [vmem:[#allocation8 + $0x200] sm:$0xff]
    %v139 = vld [vmem:[#allocation8 + $0x208] sm:$0xff]
    %v140 = vld [vmem:[#allocation8 + $0x210] sm:$0xff]
    %v141 = vld [vmem:[#allocation8 + $0x218] sm:$0xff]
    %v142 = vld [vmem:[#allocation8 + $0x220] sm:$0xff]
    %v143 = vld [vmem:[#allocation8 + $0x228] sm:$0xff]
    %v144 = vld [vmem:[#allocation8 + $0x230] sm:$0xff]
    %v145 = vld [vmem:[#allocation8 + $0x238] sm:$0xff]
    %v146 = vld [vmem:[#allocation8 + $0x240] sm:$0xff]
    %v147 = vld [vmem:[#allocation8 + $0x248] sm:$0xff]
    %v148 = vld [vmem:[#allocation8 + $0x250] sm:$0xff]
    %v149 = vld [vmem:[#allocation8 + $0x258] sm:$0xff]
    %v150 = vld [vmem:[#allocation8 + $0x260] sm:$0xff]
    %v151 = vld [vmem:[#allocation8 + $0x268] sm:$0xff]
    %v152 = vld [vmem:[#allocation8 + $0x270] sm:$0xff]
    %v153 = vld [vmem:[#allocation8 + $0x278] sm:$0xff]
    %v154 = vld [vmem:[#allocation8 + $0x280] sm:$0xff]
    %v155 = vld [vmem:[#allocation8 + $0x288] sm:$0xff]
    %v156 = vld [vmem:[#allocation8 + $0x290] sm:$0xff]
    %v157 = vld [vmem:[#allocation8 + $0x298] sm:$0xff]
    %v158 = vld [vmem:[#allocation8 + $0x2a0] sm:$0xff]
    %v159 = vld [vmem:[#allocation8 + $0x2a8] sm:$0xff]
    %v160 = vld [vmem:[#allocation8 + $0x2b0] sm:$0xff]
    %v161 = vld [vmem:[#allocation8 + $0x2b8] sm:$0xff]
    %v162 = vld [vmem:[#allocation8 + $0x2c0] sm:$0xff]
    %v163 = vld [vmem:[#allocation8 + $0x2c8] sm:$0xff]
    %v164 = vld [vmem:[#allocation8 + $0x2d0] sm:$0xff]
    %v165 = vld [vmem:[#allocation8 + $0x2d8] sm:$0xff]
    %v166 = vld [vmem:[#allocation8 + $0x2e0] sm:$0xff]
    %v167 = vld [vmem:[#allocation8 + $0x2e8] sm:$0xff]
    %v168 = vld [vmem:[#allocation8 + $0x2f0] sm:$0xff]
    %v169 = vld [vmem:[#allocation8 + $0x2f8] sm:$0xff]
    %v170 = vld [vmem:[#allocation8 + $0x300] sm:$0xff]
    %v171 = vld [vmem:[#allocation8 + $0x308] sm:$0xff]
    %v172 = vld [vmem:[#allocation8 + $0x310] sm:$0xff]
    %v173 = vld [vmem:[#allocation8 + $0x318] sm:$0xff]
    %v174 = vld [vmem:[#allocation8 + $0x320] sm:$0xff]
    %v175 = vld [vmem:[#allocation8 + $0x328] sm:$0xff]
    %v176 = vld [vmem:[#allocation8 + $0x330] sm:$0xff]
    %v177 = vld [vmem:[#allocation8 + $0x338] sm:$0xff]
    %v178 = vld [vmem:[#allocation8 + $0x340] sm:$0xff]
    %v179 = vld [vmem:[#allocation8 + $0x348] sm:$0xff]
    %v180 = vld [vmem:[#allocation8 + $0x350] sm:$0xff]
    %v181 = vld [vmem:[#allocation8 + $0x358] sm:$0xff]
    %v182 = vld [vmem:[#allocation8 + $0x360] sm:$0xff]
    %v183 = vld [vmem:[#allocation8 + $0x368] sm:$0xff]
    %v184 = vld [vmem:[#allocation8 + $0x370] sm:$0xff]
    %v185 = vld [vmem:[#allocation8 + $0x378] sm:$0xff]
    %v186 = vld [vmem:[#allocation8 + $0x380] sm:$0xff]
    %v187 = vld [vmem:[#allocation8 + $0x388] sm:$0xff]
    %v188 = vld [vmem:[#allocation8 + $0x390] sm:$0xff]
    %v189 = vld [vmem:[#allocation8 + $0x398] sm:$0xff]
    %v190 = vld [vmem:[#allocation8 + $0x3a0] sm:$0xff]
    %v191 = vld [vmem:[#allocation8 + $0x3a8] sm:$0xff]
    %v192 = vld [vmem:[#allocation8 + $0x3b0] sm:$0xff]
    %v193 = vld [vmem:[#allocation8 + $0x3b8] sm:$0xff]
    %v194 = vld [vmem:[#allocation8 + $0x3c0] sm:$0xff]
    %v195 = vld [vmem:[#allocation8 + $0x3c8] sm:$0xff]
    %v196 = vld [vmem:[#allocation8 + $0x3d0] sm:$0xff]
    %v197 = vld [vmem:[#allocation8 + $0x3d8] sm:$0xff]
    %v198 = vld [vmem:[#allocation8 + $0x3e0] sm:$0xff]
    %v199 = vld [vmem:[#allocation8 + $0x3e8] sm:$0xff]
    %v200 = vld [vmem:[#allocation8 + $0x3f0] sm:$0xff]
    %v201 = vld [vmem:[#allocation8 + $0x3f8] sm:$0xff]
    %v202 = vld [vmem:[#allocation8 + $0x400] sm:$0xff]
    %v203 = vld [vmem:[#allocation8 + $0x408] sm:$0xff]
    %v204 = vld [vmem:[#allocation8 + $0x410] sm:$0xff]
    %v205 = vld [vmem:[#allocation8 + $0x418] sm:$0xff]
    %vm206 = vcmask 261120
    %v208 = vsel %vm206, %v73, 0
    %210 = vmatprep.subr.mxu0 %v75
    %211 = vmatpush1.msra.mxu0 %v74
    %212 = vmatprep.subr.mxu0 %v108
    %213 = vmatpush1.msra.mxu0 %v107
    %214 = vmatprep.subr.mxu0 %v141
    %215 = vmatpush1.msra.mxu0 %v140
    %216 = vmatprep.subr.mxu0 %v174
    %217 = vmatpush1.msra.mxu0 %v173
    %218 = vmatprep.subr.mxu0 0.0
    %219 = vmatpush1.msra.mxu0 0.0
    %220 = vmatprep.subr.mxu0 0.0
    %221 = vmatpush1.msra.mxu0 0.0
    %222 = vmatprep.subr.mxu0 0.0
    %223 = vmatpush1.msra.mxu0 0.0
    %224 = vmatprep.subr.mxu0 0.0
    %225 = vmatpush1.msra.mxu0 0.0
    %226 = vmatprep.subr.mxu0 0.0
    %227 = vmatpush1.msra.mxu0 0.0
    %228 = vmatprep.subr.mxu0 0.0
    %229 = vmatpush1.msra.mxu0 0.0
    %230 = vmatprep.subr.mxu0 0.0
    %231 = vmatpush1.msra.mxu0 0.0
    %232 = vmatprep.subr.mxu0 0.0
    %233 = vmatpush1.msra.mxu0 0.0
    %234 = vmatprep.subr.mxu0 0.0
    %235 = vmatpush1.msra.mxu0 0.0
    %236 = vmatprep.subr.mxu0 0.0
    %237 = vmatpush1.msra.mxu0 0.0
    %238 = vmatprep.subr.mxu0 0.0
    %239 = vmatpush1.msra.mxu0 0.0
    %240 = vmatprep.subr.mxu0 0.0
    %241 = vmatpush1.msra.mxu0 0.0
    %242 = vmatprep.subr.mxu0 0.0
    %243 = vmatpush1.msra.mxu0 0.0
    %244 = vmatprep.subr.mxu0 0.0
    %245 = vmatpush1.msra.mxu0 0.0
    %246 = vmatprep.subr.mxu0 0.0
    %247 = vmatpush1.msra.mxu0 0.0
    %248 = vmatprep.subr.mxu0 0.0
    %249 = vmatpush1.msra.mxu0 0.0
    %250 = vmatprep.subr.mxu0 0.0
    %251 = vmatpush1.msra.mxu0 0.0
    %252 = vmatprep.subr.mxu0 0.0
    %253 = vmatpush1.msra.mxu0 0.0
    %254 = vmatprep.subr.mxu0 0.0
    %255 = vmatpush1.msra.mxu0 0.0
    %256 = vmatprep.subr.mxu0 0.0
    %257 = vmatpush1.msra.mxu0 0.0
    %258 = vmatprep.subr.mxu0 0.0
    %259 = vmatpush1.msra.mxu0 0.0
    %260 = vmatprep.subr.mxu0 0.0
    %261 = vmatpush1.msra.mxu0 0.0
    %262 = vmatprep.subr.mxu0 0.0
    %263 = vmatpush1.msra.mxu0 0.0
    %264 = vmatprep.subr.mxu0 0.0
    %265 = vmatpush1.msra.mxu0 0.0
    %266 = vmatprep.subr.mxu0 0.0
    %267 = vmatpush1.msra.mxu0 0.0
    %268 = vmatprep.subr.mxu0 0.0
    %269 = vmatpush1.msra.mxu0 0.0
    %270 = vmatprep.subr.mxu0 0.0
    %271 = vmatpush1.msra.mxu0 0.0
    %272 = vmatprep.subr.mxu0 0.0
    %273 = vmatpush1.msra.mxu0 0.0
    %274 = vmatprep.mubr.f32.mxu0 0.0
    %275 = vmatmul.mubr.f32.gmra.mrb[0].mxu0 %v208
    %v276 = vpop.f32.mrb[0].mxu0
    %v277 = vadd.f32 0.0, %v276
    %v278 = vpop.f32.mrb[0].mxu0
    %v279 = vadd.f32 0.0, %v278
    %280 = vdwg.mxu0
    %281 = vmatprep.subr.mxu0 %v77
    %282 = vmatpush1.msra.mxu0 %v76
    %283 = vmatprep.subr.mxu0 %v110
    %284 = vmatpush1.msra.mxu0 %v109
    %285 = vmatprep.subr.mxu0 %v143
    %286 = vmatpush1.msra.mxu0 %v142
    %287 = vmatprep.subr.mxu0 %v176
    %288 = vmatpush1.msra.mxu0 %v175
    %289 = vmatprep.subr.mxu0 0.0
    %290 = vmatpush1.msra.mxu0 0.0
    %291 = vmatprep.subr.mxu0 0.0
    %292 = vmatpush1.msra.mxu0 0.0
    %293 = vmatprep.subr.mxu0 0.0
    %294 = vmatpush1.msra.mxu0 0.0
    %295 = vmatprep.subr.mxu0 0.0
    %296 = vmatpush1.msra.mxu0 0.0
    %297 = vmatprep.subr.mxu0 0.0
    %298 = vmatpush1.msra.mxu0 0.0
    %299 = vmatprep.subr.mxu0 0.0
    %300 = vmatpush1.msra.mxu0 0.0
    %301 = vmatprep.subr.mxu0 0.0
    %302 = vmatpush1.msra.mxu0 0.0
    %303 = vmatprep.subr.mxu0 0.0
    %304 = vmatpush1.msra.mxu0 0.0
    %305 = vmatprep.subr.mxu0 0.0
    %306 = vmatpush1.msra.mxu0 0.0
    %307 = vmatprep.subr.mxu0 0.0
    %308 = vmatpush1.msra.mxu0 0.0
    %309 = vmatprep.subr.mxu0 0.0
    %310 = vmatpush1.msra.mxu0 0.0
    %311 = vmatprep.subr.mxu0 0.0
    %312 = vmatpush1.msra.mxu0 0.0
    %313 = vmatprep.subr.mxu0 0.0
    %314 = vmatpush1.msra.mxu0 0.0
    %315 = vmatprep.subr.mxu0 0.0
    %316 = vmatpush1.msra.mxu0 0.0
    %317 = vmatprep.subr.mxu0 0.0
    %318 = vmatpush1.msra.mxu0 0.0
    %319 = vmatprep.subr.mxu0 0.0
    %320 = vmatpush1.msra.mxu0 0.0
    %321 = vmatprep.subr.mxu0 0.0
    %322 = vmatpush1.msra.mxu0 0.0
    %323 = vmatprep.subr.mxu0 0.0
    %324 = vmatpush1.msra.mxu0 0.0
    %325 = vmatprep.subr.mxu0 0.0
    %326 = vmatpush1.msra.mxu0 0.0
    %327 = vmatprep.subr.mxu0 0.0
    %328 = vmatpush1.msra.mxu0 0.0
    %329 = vmatprep.subr.mxu0 0.0
    %330 = vmatpush1.msra.mxu0 0.0
    %331 = vmatprep.subr.mxu0 0.0
    %332 = vmatpush1.msra.mxu0 0.0
    %333 = vmatprep.subr.mxu0 0.0
    %334 = vmatpush1.msra.mxu0 0.0
    %335 = vmatprep.subr.mxu0 0.0
    %336 = vmatpush1.msra.mxu0 0.0
    %337 = vmatprep.subr.mxu0 0.0
    %338 = vmatpush1.msra.mxu0 0.0
    %339 = vmatprep.subr.mxu0 0.0
    %340 = vmatpush1.msra.mxu0 0.0
    %341 = vmatprep.subr.mxu0 0.0
    %342 = vmatpush1.msra.mxu0 0.0
    %343 = vmatprep.subr.mxu0 0.0
    %344 = vmatpush1.msra.mxu0 0.0
    %345 = vmatprep.mubr.f32.mxu0 0.0
    %346 = vmatmul.mubr.f32.gmra.mrb[0].mxu0 %v208
    %v347 = vpop.f32.mrb[0].mxu0
    %v348 = vadd.f32 0.0, %v347
    %v349 = vpop.f32.mrb[0].mxu0
    %v350 = vadd.f32 0.0, %v349
    %351 = vdwg.mxu0
    %352 = vmatprep.subr.mxu0 %v79
    %353 = vmatpush1.msra.mxu0 %v78
    %354 = vmatprep.subr.mxu0 %v112
    %355 = vmatpush1.msra.mxu0 %v111
    %356 = vmatprep.subr.mxu0 %v145
    %357 = vmatpush1.msra.mxu0 %v144
    %358 = vmatprep.subr.mxu0 %v178
    %359 = vmatpush1.msra.mxu0 %v177
    %360 = vmatprep.subr.mxu0 0.0
    %361 = vmatpush1.msra.mxu0 0.0
    %362 = vmatprep.subr.mxu0 0.0
    %363 = vmatpush1.msra.mxu0 0.0
    %364 = vmatprep.subr.mxu0 0.0
    %365 = vmatpush1.msra.mxu0 0.0
    %366 = vmatprep.subr.mxu0 0.0
    %367 = vmatpush1.msra.mxu0 0.0
    %368 = vmatprep.subr.mxu0 0.0
    %369 = vmatpush1.msra.mxu0 0.0
    %370 = vmatprep.subr.mxu0 0.0
    %371 = vmatpush1.msra.mxu0 0.0
    %372 = vmatprep.subr.mxu0 0.0
    %373 = vmatpush1.msra.mxu0 0.0
    %374 = vmatprep.subr.mxu0 0.0
    %375 = vmatpush1.msra.mxu0 0.0
    %376 = vmatprep.subr.mxu0 0.0
    %377 = vmatpush1.msra.mxu0 0.0
    %378 = vmatprep.subr.mxu0 0.0
    %379 = vmatpush1.msra.mxu0 0.0
    %380 = vmatprep.subr.mxu0 0.0
    %381 = vmatpush1.msra.mxu0 0.0
    %382 = vmatprep.subr.mxu0 0.0
    %383 = vmatpush1.msra.mxu0 0.0
    %384 = vmatprep.subr.mxu0 0.0
    %385 = vmatpush1.msra.mxu0 0.0
    %386 = vmatprep.subr.mxu0 0.0
    %387 = vmatpush1.msra.mxu0 0.0
    %388 = vmatprep.subr.mxu0 0.0
    %389 = vmatpush1.msra.mxu0 0.0
    %390 = vmatprep.subr.mxu0 0.0
    %391 = vmatpush1.msra.mxu0 0.0
    %392 = vmatprep.subr.mxu0 0.0
    %393 = vmatpush1.msra.mxu0 0.0
    %394 = vmatprep.subr.mxu0 0.0
    %395 = vmatpush1.msra.mxu0 0.0
    %396 = vmatprep.subr.mxu0 0.0
    %397 = vmatpush1.msra.mxu0 0.0
    %398 = vmatprep.subr.mxu0 0.0
    %399 = vmatpush1.msra.mxu0 0.0
    %400 = vmatprep.subr.mxu0 0.0
    %401 = vmatpush1.msra.mxu0 0.0
    %402 = vmatprep.subr.mxu0 0.0
    %403 = vmatpush1.msra.mxu0 0.0
    %404 = vmatprep.subr.mxu0 0.0
    %405 = vmatpush1.msra.mxu0 0.0
    %406 = vmatprep.subr.mxu0 0.0
    %407 = vmatpush1.msra.mxu0 0.0
    %408 = vmatprep.subr.mxu0 0.0
    %409 = vmatpush1.msra.mxu0 0.0
    %410 = vmatprep.subr.mxu0 0.0
    %411 = vmatpush1.msra.mxu0 0.0
    %412 = vmatprep.subr.mxu0 0.0
    %413 = vmatpush1.msra.mxu0 0.0
    %414 = vmatprep.subr.mxu0 0.0
    %415 = vmatpush1.msra.mxu0 0.0
    %416 = vmatprep.mubr.f32.mxu0 0.0
    %417 = vmatmul.mubr.f32.gmra.mrb[0].mxu0 %v208
    %v418 = vpop.f32.mrb[0].mxu0
    %v419 = vadd.f32 0.0, %v418
    %v420 = vpop.f32.mrb[0].mxu0
    %v421 = vadd.f32 0.0, %v420
    %422 = vdwg.mxu0
    %423 = vmatprep.subr.mxu0 %v81
    %424 = vmatpush1.msra.mxu0 %v80
    %425 = vmatprep.subr.mxu0 %v114
    %426 = vmatpush1.msra.mxu0 %v113
    %427 = vmatprep.subr.mxu0 %v147
    %428 = vmatpush1.msra.mxu0 %v146
    %429 = vmatprep.subr.mxu0 %v180
    %430 = vmatpush1.msra.mxu0 %v179
    %431 = vmatprep.subr.mxu0 0.0
    %432 = vmatpush1.msra.mxu0 0.0
    %433 = vmatprep.subr.mxu0 0.0
    %434 = vmatpush1.msra.mxu0 0.0
    %435 = vmatprep.subr.mxu0 0.0
    %436 = vmatpush1.msra.mxu0 0.0
    %437 = vmatprep.subr.mxu0 0.0
    %438 = vmatpush1.msra.mxu0 0.0
    %439 = vmatprep.subr.mxu0 0.0
    %440 = vmatpush1.msra.mxu0 0.0
    %441 = vmatprep.subr.mxu0 0.0
    %442 = vmatpush1.msra.mxu0 0.0
    %443 = vmatprep.subr.mxu0 0.0
    %444 = vmatpush1.msra.mxu0 0.0
    %445 = vmatprep.subr.mxu0 0.0
    %446 = vmatpush1.msra.mxu0 0.0
    %447 = vmatprep.subr.mxu0 0.0
    %448 = vmatpush1.msra.mxu0 0.0
    %449 = vmatprep.subr.mxu0 0.0
    %450 = vmatpush1.msra.mxu0 0.0
    %451 = vmatprep.subr.mxu0 0.0
    %452 = vmatpush1.msra.mxu0 0.0
    %453 = vmatprep.subr.mxu0 0.0
    %454 = vmatpush1.msra.mxu0 0.0
    %455 = vmatprep.subr.mxu0 0.0
    %456 = vmatpush1.msra.mxu0 0.0
    %457 = vmatprep.subr.mxu0 0.0
    %458 = vmatpush1.msra.mxu0 0.0
    %459 = vmatprep.subr.mxu0 0.0
    %460 = vmatpush1.msra.mxu0 0.0
    %461 = vmatprep.subr.mxu0 0.0
    %462 = vmatpush1.msra.mxu0 0.0
    %463 = vmatprep.subr.mxu0 0.0
    %464 = vmatpush1.msra.mxu0 0.0
    %465 = vmatprep.subr.mxu0 0.0
    %466 = vmatpush1.msra.mxu0 0.0
    %467 = vmatprep.subr.mxu0 0.0
    %468 = vmatpush1.msra.mxu0 0.0
    %469 = vmatprep.subr.mxu0 0.0
    %470 = vmatpush1.msra.mxu0 0.0
    %471 = vmatprep.subr.mxu0 0.0
    %472 = vmatpush1.msra.mxu0 0.0
    %473 = vmatprep.subr.mxu0 0.0
    %474 = vmatpush1.msra.mxu0 0.0
    %475 = vmatprep.subr.mxu0 0.0
    %476 = vmatpush1.msra.mxu0 0.0
    %477 = vmatprep.subr.mxu0 0.0
    %478 = vmatpush1.msra.mxu0 0.0
    %479 = vmatprep.subr.mxu0 0.0
    %480 = vmatpush1.msra.mxu0 0.0
    %481 = vmatprep.subr.mxu0 0.0
    %482 = vmatpush1.msra.mxu0 0.0
    %483 = vmatprep.subr.mxu0 0.0
    %484 = vmatpush1.msra.mxu0 0.0
    %485 = vmatprep.subr.mxu0 0.0
    %486 = vmatpush1.msra.mxu0 0.0
    %487 = vmatprep.mubr.f32.mxu0 0.0
    %488 = vmatmul.mubr.f32.gmra.mrb[0].mxu0 %v208
    %v489 = vpop.f32.mrb[0].mxu0
    %v490 = vadd.f32 0.0, %v489
    %v491 = vpop.f32.mrb[0].mxu0
    %v492 = vadd.f32 0.0, %v491
    %493 = vdwg.mxu0
    %494 = vmatprep.subr.mxu0 %v83
    %495 = vmatpush1.msra.mxu0 %v82
    %496 = vmatprep.subr.mxu0 %v116
    %497 = vmatpush1.msra.mxu0 %v115
    %498 = vmatprep.subr.mxu0 %v149
    %499 = vmatpush1.msra.mxu0 %v148
    %500 = vmatprep.subr.mxu0 %v182
    %501 = vmatpush1.msra.mxu0 %v181
    %502 = vmatprep.subr.mxu0 0.0
    %503 = vmatpush1.msra.mxu0 0.0
    %504 = vmatprep.subr.mxu0 0.0
    %505 = vmatpush1.msra.mxu0 0.0
    %506 = vmatprep.subr.mxu0 0.0
    %507 = vmatpush1.msra.mxu0 0.0
    %508 = vmatprep.subr.mxu0 0.0
    %509 = vmatpush1.msra.mxu0 0.0
    %510 = vmatprep.subr.mxu0 0.0
    %511 = vmatpush1.msra.mxu0 0.0
    %512 = vmatprep.subr.mxu0 0.0
    %513 = vmatpush1.msra.mxu0 0.0
    %514 = vmatprep.subr.mxu0 0.0
    %515 = vmatpush1.msra.mxu0 0.0
    %516 = vmatprep.subr.mxu0 0.0
    %517 = vmatpush1.msra.mxu0 0.0
    %518 = vmatprep.subr.mxu0 0.0
    %519 = vmatpush1.msra.mxu0 0.0
    %520 = vmatprep.subr.mxu0 0.0
    %521 = vmatpush1.msra.mxu0 0.0
    %522 = vmatprep.subr.mxu0 0.0
    %523 = vmatpush1.msra.mxu0 0.0
    %524 = vmatprep.subr.mxu0 0.0
    %525 = vmatpush1.msra.mxu0 0.0
    %526 = vmatprep.subr.mxu0 0.0
    %527 = vmatpush1.msra.mxu0 0.0
    %528 = vmatprep.subr.mxu0 0.0
    %529 = vmatpush1.msra.mxu0 0.0
    %530 = vmatprep.subr.mxu0 0.0
    %531 = vmatpush1.msra.mxu0 0.0
    %532 = vmatprep.subr.mxu0 0.0
    %533 = vmatpush1.msra.mxu0 0.0
    %534 = vmatprep.subr.mxu0 0.0
    %535 = vmatpush1.msra.mxu0 0.0
    %536 = vmatprep.subr.mxu0 0.0
    %537 = vmatpush1.msra.mxu0 0.0
    %538 = vmatprep.subr.mxu0 0.0
    %539 = vmatpush1.msra.mxu0 0.0
    %540 = vmatprep.subr.mxu0 0.0
    %541 = vmatpush1.msra.mxu0 0.0
    %542 = vmatprep.subr.mxu0 0.0
    %543 = vmatpush1.msra.mxu0 0.0
    %544 = vmatprep.subr.mxu0 0.0
    %545 = vmatpush1.msra.mxu0 0.0
    %546 = vmatprep.subr.mxu0 0.0
    %547 = vmatpush1.msra.mxu0 0.0
    %548 = vmatprep.subr.mxu0 0.0
    %549 = vmatpush1.msra.mxu0 0.0
    %550 = vmatprep.subr.mxu0 0.0
    %551 = vmatpush1.msra.mxu0 0.0
    %552 = vmatprep.subr.mxu0 0.0
    %553 = vmatpush1.msra.mxu0 0.0
    %554 = vmatprep.subr.mxu0 0.0
    %555 = vmatpush1.msra.mxu0 0.0
    %556 = vmatprep.subr.mxu0 0.0
    %557 = vmatpush1.msra.mxu0 0.0
    %558 = vmatprep.mubr.f32.mxu0 0.0
    %559 = vmatmul.mubr.f32.gmra.mrb[0].mxu0 %v208
    %v560 = vpop.f32.mrb[0].mxu0
    %v561 = vadd.f32 0.0, %v560
    %v562 = vpop.f32.mrb[0].mxu0
    %v563 = vadd.f32 0.0, %v562
    %564 = vdwg.mxu0
    %565 = vmatprep.subr.mxu0 %v85
    %566 = vmatpush1.msra.mxu0 %v84
    %567 = vmatprep.subr.mxu0 %v118
    %568 = vmatpush1.msra.mxu0 %v117
    %569 = vmatprep.subr.mxu0 %v151
    %570 = vmatpush1.msra.mxu0 %v150
    %571 = vmatprep.subr.mxu0 %v184
    %572 = vmatpush1.msra.mxu0 %v183
    %573 = vmatprep.subr.mxu0 0.0
    %574 = vmatpush1.msra.mxu0 0.0
    %575 = vmatprep.subr.mxu0 0.0
    %576 = vmatpush1.msra.mxu0 0.0
    %577 = vmatprep.subr.mxu0 0.0
    %578 = vmatpush1.msra.mxu0 0.0
    %579 = vmatprep.subr.mxu0 0.0
    %580 = vmatpush1.msra.mxu0 0.0
    %581 = vmatprep.subr.mxu0 0.0
    %582 = vmatpush1.msra.mxu0 0.0
    %583 = vmatprep.subr.mxu0 0.0
    %584 = vmatpush1.msra.mxu0 0.0
    %585 = vmatprep.subr.mxu0 0.0
    %586 = vmatpush1.msra.mxu0 0.0
    %587 = vmatprep.subr.mxu0 0.0
    %588 = vmatpush1.msra.mxu0 0.0
    %589 = vmatprep.subr.mxu0 0.0
    %590 = vmatpush1.msra.mxu0 0.0
    %591 = vmatprep.subr.mxu0 0.0
    %592 = vmatpush1.msra.mxu0 0.0
    %593 = vmatprep.subr.mxu0 0.0
    %594 = vmatpush1.msra.mxu0 0.0
    %595 = vmatprep.subr.mxu0 0.0
    %596 = vmatpush1.msra.mxu0 0.0
    %597 = vmatprep.subr.mxu0 0.0
    %598 = vmatpush1.msra.mxu0 0.0
    %599 = vmatprep.subr.mxu0 0.0
    %600 = vmatpush1.msra.mxu0 0.0
    %601 = vmatprep.subr.mxu0 0.0
    %602 = vmatpush1.msra.mxu0 0.0
    %603 = vmatprep.subr.mxu0 0.0
    %604 = vmatpush1.msra.mxu0 0.0
    %605 = vmatprep.subr.mxu0 0.0
    %606 = vmatpush1.msra.mxu0 0.0
    %607 = vmatprep.subr.mxu0 0.0
    %608 = vmatpush1.msra.mxu0 0.0
    %609 = vmatprep.subr.mxu0 0.0
    %610 = vmatpush1.msra.mxu0 0.0
    %611 = vmatprep.subr.mxu0 0.0
    %612 = vmatpush1.msra.mxu0 0.0
    %613 = vmatprep.subr.mxu0 0.0
    %614 = vmatpush1.msra.mxu0 0.0
    %615 = vmatprep.subr.mxu0 0.0
    %616 = vmatpush1.msra.mxu0 0.0
    %617 = vmatprep.subr.mxu0 0.0
    %618 = vmatpush1.msra.mxu0 0.0
    %619 = vmatprep.subr.mxu0 0.0
    %620 = vmatpush1.msra.mxu0 0.0
    %621 = vmatprep.subr.mxu0 0.0
    %622 = vmatpush1.msra.mxu0 0.0
    %623 = vmatprep.subr.mxu0 0.0
    %624 = vmatpush1.msra.mxu0 0.0
    %625 = vmatprep.subr.mxu0 0.0
    %626 = vmatpush1.msra.mxu0 0.0
    %627 = vmatprep.subr.mxu0 0.0
    %628 = vmatpush1.msra.mxu0 0.0
    %629 = vmatprep.mubr.f32.mxu0 0.0
    %630 = vmatmul.mubr.f32.gmra.mrb[0].mxu0 %v208
    %v631 = vpop.f32.mrb[0].mxu0
    %v632 = vadd.f32 0.0, %v631
    %v633 = vpop.f32.mrb[0].mxu0
    %v634 = vadd.f32 0.0, %v633
    %635 = vdwg.mxu0
    %636 = vmatprep.subr.mxu0 %v87
    %637 = vmatpush1.msra.mxu0 %v86
    %638 = vmatprep.subr.mxu0 %v120
    %639 = vmatpush1.msra.mxu0 %v119
    %640 = vmatprep.subr.mxu0 %v153
    %641 = vmatpush1.msra.mxu0 %v152
    %642 = vmatprep.subr.mxu0 %v186
    %643 = vmatpush1.msra.mxu0 %v185
    %644 = vmatprep.subr.mxu0 0.0
    %645 = vmatpush1.msra.mxu0 0.0
    %646 = vmatprep.subr.mxu0 0.0
    %647 = vmatpush1.msra.mxu0 0.0
    %648 = vmatprep.subr.mxu0 0.0
    %649 = vmatpush1.msra.mxu0 0.0
    %650 = vmatprep.subr.mxu0 0.0
    %651 = vmatpush1.msra.mxu0 0.0
    %652 = vmatprep.subr.mxu0 0.0
    %653 = vmatpush1.msra.mxu0 0.0
    %654 = vmatprep.subr.mxu0 0.0
    %655 = vmatpush1.msra.mxu0 0.0
    %656 = vmatprep.subr.mxu0 0.0
    %657 = vmatpush1.msra.mxu0 0.0
    %658 = vmatprep.subr.mxu0 0.0
    %659 = vmatpush1.msra.mxu0 0.0
    %660 = vmatprep.subr.mxu0 0.0
    %661 = vmatpush1.msra.mxu0 0.0
    %662 = vmatprep.subr.mxu0 0.0
    %663 = vmatpush1.msra.mxu0 0.0
    %664 = vmatprep.subr.mxu0 0.0
    %665 = vmatpush1.msra.mxu0 0.0
    %666 = vmatprep.subr.mxu0 0.0
    %667 = vmatpush1.msra.mxu0 0.0
    %668 = vmatprep.subr.mxu0 0.0
    %669 = vmatpush1.msra.mxu0 0.0
    %670 = vmatprep.subr.mxu0 0.0
    %671 = vmatpush1.msra.mxu0 0.0
    %672 = vmatprep.subr.mxu0 0.0
    %673 = vmatpush1.msra.mxu0 0.0
    %674 = vmatprep.subr.mxu0 0.0
    %675 = vmatpush1.msra.mxu0 0.0
    %676 = vmatprep.subr.mxu0 0.0
    %677 = vmatpush1.msra.mxu0 0.0
    %678 = vmatprep.subr.mxu0 0.0
    %679 = vmatpush1.msra.mxu0 0.0
    %680 = vmatprep.subr.mxu0 0.0
    %681 = vmatpush1.msra.mxu0 0.0
    %682 = vmatprep.subr.mxu0 0.0
    %683 = vmatpush1.msra.mxu0 0.0
    %684 = vmatprep.subr.mxu0 0.0
    %685 = vmatpush1.msra.mxu0 0.0
    %686 = vmatprep.subr.mxu0 0.0
    %687 = vmatpush1.msra.mxu0 0.0
    %688 = vmatprep.subr.mxu0 0.0
    %689 = vmatpush1.msra.mxu0 0.0
    %690 = vmatprep.subr.mxu0 0.0
    %691 = vmatpush1.msra.mxu0 0.0
    %692 = vmatprep.subr.mxu0 0.0
    %693 = vmatpush1.msra.mxu0 0.0
    %694 = vmatprep.subr.mxu0 0.0
    %695 = vmatpush1.msra.mxu0 0.0
    %696 = vmatprep.subr.mxu0 0.0
    %697 = vmatpush1.msra.mxu0 0.0
    %698 = vmatprep.subr.mxu0 0.0
    %699 = vmatpush1.msra.mxu0 0.0
    %700 = vmatprep.mubr.f32.mxu0 0.0
    %701 = vmatmul.mubr.f32.gmra.mrb[0].mxu0 %v208
    %v702 = vpop.f32.mrb[0].mxu0
    %v703 = vadd.f32 0.0, %v702
    %v704 = vpop.f32.mrb[0].mxu0
    %v705 = vadd.f32 0.0, %v704
    %706 = vdwg.mxu0
    %707 = vmatprep.subr.mxu0 %v89
    %708 = vmatpush1.msra.mxu0 %v88
    %709 = vmatprep.subr.mxu0 %v122
    %710 = vmatpush1.msra.mxu0 %v121
    %711 = vmatprep.subr.mxu0 %v155
    %712 = vmatpush1.msra.mxu0 %v154
    %713 = vmatprep.subr.mxu0 %v188
    %714 = vmatpush1.msra.mxu0 %v187
    %715 = vmatprep.subr.mxu0 0.0
    %716 = vmatpush1.msra.mxu0 0.0
    %717 = vmatprep.subr.mxu0 0.0
    %718 = vmatpush1.msra.mxu0 0.0
    %719 = vmatprep.subr.mxu0 0.0
    %720 = vmatpush1.msra.mxu0 0.0
    %721 = vmatprep.subr.mxu0 0.0
    %722 = vmatpush1.msra.mxu0 0.0
    %723 = vmatprep.subr.mxu0 0.0
    %724 = vmatpush1.msra.mxu0 0.0
    %725 = vmatprep.subr.mxu0 0.0
    %726 = vmatpush1.msra.mxu0 0.0
    %727 = vmatprep.subr.mxu0 0.0
    %728 = vmatpush1.msra.mxu0 0.0
    %729 = vmatprep.subr.mxu0 0.0
    %730 = vmatpush1.msra.mxu0 0.0
    %731 = vmatprep.subr.mxu0 0.0
    %732 = vmatpush1.msra.mxu0 0.0
    %733 = vmatprep.subr.mxu0 0.0
    %734 = vmatpush1.msra.mxu0 0.0
    %735 = vmatprep.subr.mxu0 0.0
    %736 = vmatpush1.msra.mxu0 0.0
    %737 = vmatprep.subr.mxu0 0.0
    %738 = vmatpush1.msra.mxu0 0.0
    %739 = vmatprep.subr.mxu0 0.0
    %740 = vmatpush1.msra.mxu0 0.0
    %741 = vmatprep.subr.mxu0 0.0
    %742 = vmatpush1.msra.mxu0 0.0
    %743 = vmatprep.subr.mxu0 0.0
    %744 = vmatpush1.msra.mxu0 0.0
    %745 = vmatprep.subr.mxu0 0.0
    %746 = vmatpush1.msra.mxu0 0.0
    %747 = vmatprep.subr.mxu0 0.0
    %748 = vmatpush1.msra.mxu0 0.0
    %749 = vmatprep.subr.mxu0 0.0
    %750 = vmatpush1.msra.mxu0 0.0
    %751 = vmatprep.subr.mxu0 0.0
    %752 = vmatpush1.msra.mxu0 0.0
    %753 = vmatprep.subr.mxu0 0.0
    %754 = vmatpush1.msra.mxu0 0.0
    %755 = vmatprep.subr.mxu0 0.0
    %756 = vmatpush1.msra.mxu0 0.0
    %757 = vmatprep.subr.mxu0 0.0
    %758 = vmatpush1.msra.mxu0 0.0
    %759 = vmatprep.subr.mxu0 0.0
    %760 = vmatpush1.msra.mxu0 0.0
    %761 = vmatprep.subr.mxu0 0.0
    %762 = vmatpush1.msra.mxu0 0.0
    %763 = vmatprep.subr.mxu0 0.0
    %764 = vmatpush1.msra.mxu0 0.0
    %765 = vmatprep.subr.mxu0 0.0
    %766 = vmatpush1.msra.mxu0 0.0
    %767 = vmatprep.subr.mxu0 0.0
    %768 = vmatpush1.msra.mxu0 0.0
    %769 = vmatprep.subr.mxu0 0.0
    %770 = vmatpush1.msra.mxu0 0.0
    %771 = vmatprep.mubr.f32.mxu0 0.0
    %772 = vmatmul.mubr.f32.gmra.mrb[0].mxu0 %v208
    %v773 = vpop.f32.mrb[0].mxu0
    %v774 = vadd.f32 0.0, %v773
    %v775 = vpop.f32.mrb[0].mxu0
    %v776 = vadd.f32 0.0, %v775
    %777 = vdwg.mxu0
    %778 = vmatprep.subr.mxu0 %v91
    %779 = vmatpush1.msra.mxu0 %v90
    %780 = vmatprep.subr.mxu0 %v124
    %781 = vmatpush1.msra.mxu0 %v123
    %782 = vmatprep.subr.mxu0 %v157
    %783 = vmatpush1.msra.mxu0 %v156
    %784 = vmatprep.subr.mxu0 %v190
    %785 = vmatpush1.msra.mxu0 %v189
    %786 = vmatprep.subr.mxu0 0.0
    %787 = vmatpush1.msra.mxu0 0.0
    %788 = vmatprep.subr.mxu0 0.0
    %789 = vmatpush1.msra.mxu0 0.0
    %790 = vmatprep.subr.mxu0 0.0
    %791 = vmatpush1.msra.mxu0 0.0
    %792 = vmatprep.subr.mxu0 0.0
    %793 = vmatpush1.msra.mxu0 0.0
    %794 = vmatprep.subr.mxu0 0.0
    %795 = vmatpush1.msra.mxu0 0.0
    %796 = vmatprep.subr.mxu0 0.0
    %797 = vmatpush1.msra.mxu0 0.0
    %798 = vmatprep.subr.mxu0 0.0
    %799 = vmatpush1.msra.mxu0 0.0
    %800 = vmatprep.subr.mxu0 0.0
    %801 = vmatpush1.msra.mxu0 0.0
    %802 = vmatprep.subr.mxu0 0.0
    %803 = vmatpush1.msra.mxu0 0.0
    %804 = vmatprep.subr.mxu0 0.0
    %805 = vmatpush1.msra.mxu0 0.0
    %806 = vmatprep.subr.mxu0 0.0
    %807 = vmatpush1.msra.mxu0 0.0
    %808 = vmatprep.subr.mxu0 0.0
    %809 = vmatpush1.msra.mxu0 0.0
    %810 = vmatprep.subr.mxu0 0.0
    %811 = vmatpush1.msra.mxu0 0.0
    %812 = vmatprep.subr.mxu0 0.0
    %813 = vmatpush1.msra.mxu0 0.0
    %814 = vmatprep.subr.mxu0 0.0
    %815 = vmatpush1.msra.mxu0 0.0
    %816 = vmatprep.subr.mxu0 0.0
    %817 = vmatpush1.msra.mxu0 0.0
    %818 = vmatprep.subr.mxu0 0.0
    %819 = vmatpush1.msra.mxu0 0.0
    %820 = vmatprep.subr.mxu0 0.0
    %821 = vmatpush1.msra.mxu0 0.0
    %822 = vmatprep.subr.mxu0 0.0
    %823 = vmatpush1.msra.mxu0 0.0
    %824 = vmatprep.subr.mxu0 0.0
    %825 = vmatpush1.msra.mxu0 0.0
    %826 = vmatprep.subr.mxu0 0.0
    %827 = vmatpush1.msra.mxu0 0.0
    %828 = vmatprep.subr.mxu0 0.0
    %829 = vmatpush1.msra.mxu0 0.0
    %830 = vmatprep.subr.mxu0 0.0
    %831 = vmatpush1.msra.mxu0 0.0
    %832 = vmatprep.subr.mxu0 0.0
    %833 = vmatpush1.msra.mxu0 0.0
    %834 = vmatprep.subr.mxu0 0.0
    %835 = vmatpush1.msra.mxu0 0.0
    %836 = vmatprep.subr.mxu0 0.0
    %837 = vmatpush1.msra.mxu0 0.0
    %838 = vmatprep.subr.mxu0 0.0
    %839 = vmatpush1.msra.mxu0 0.0
    %840 = vmatprep.subr.mxu0 0.0
    %841 = vmatpush1.msra.mxu0 0.0
    %842 = vmatprep.mubr.f32.mxu0 0.0
    %843 = vmatmul.mubr.f32.gmra.mrb[0].mxu0 %v208
    %v844 = vpop.f32.mrb[0].mxu0
    %v845 = vadd.f32 0.0, %v844
    %v846 = vpop.f32.mrb[0].mxu0
    %v847 = vadd.f32 0.0, %v846
    %848 = vdwg.mxu0
    %849 = vmatprep.subr.mxu0 %v93
    %850 = vmatpush1.msra.mxu0 %v92
    %851 = vmatprep.subr.mxu0 %v126
    %852 = vmatpush1.msra.mxu0 %v125
    %853 = vmatprep.subr.mxu0 %v159
    %854 = vmatpush1.msra.mxu0 %v158
    %855 = vmatprep.subr.mxu0 %v192
    %856 = vmatpush1.msra.mxu0 %v191
    %857 = vmatprep.subr.mxu0 0.0
    %858 = vmatpush1.msra.mxu0 0.0
    %859 = vmatprep.subr.mxu0 0.0
    %860 = vmatpush1.msra.mxu0 0.0
    %861 = vmatprep.subr.mxu0 0.0
    %862 = vmatpush1.msra.mxu0 0.0
    %863 = vmatprep.subr.mxu0 0.0
    %864 = vmatpush1.msra.mxu0 0.0
    %865 = vmatprep.subr.mxu0 0.0
    %866 = vmatpush1.msra.mxu0 0.0
    %867 = vmatprep.subr.mxu0 0.0
    %868 = vmatpush1.msra.mxu0 0.0
    %869 = vmatprep.subr.mxu0 0.0
    %870 = vmatpush1.msra.mxu0 0.0
    %871 = vmatprep.subr.mxu0 0.0
    %872 = vmatpush1.msra.mxu0 0.0
    %873 = vmatprep.subr.mxu0 0.0
    %874 = vmatpush1.msra.mxu0 0.0
    %875 = vmatprep.subr.mxu0 0.0
    %876 = vmatpush1.msra.mxu0 0.0
    %877 = vmatprep.subr.mxu0 0.0
    %878 = vmatpush1.msra.mxu0 0.0
    %879 = vmatprep.subr.mxu0 0.0
    %880 = vmatpush1.msra.mxu0 0.0
    %881 = vmatprep.subr.mxu0 0.0
    %882 = vmatpush1.msra.mxu0 0.0
    %883 = vmatprep.subr.mxu0 0.0
    %884 = vmatpush1.msra.mxu0 0.0
    %885 = vmatprep.subr.mxu0 0.0
    %886 = vmatpush1.msra.mxu0 0.0
    %887 = vmatprep.subr.mxu0 0.0
    %888 = vmatpush1.msra.mxu0 0.0
    %889 = vmatprep.subr.mxu0 0.0
    %890 = vmatpush1.msra.mxu0 0.0
    %891 = vmatprep.subr.mxu0 0.0
    %892 = vmatpush1.msra.mxu0 0.0
    %893 = vmatprep.subr.mxu0 0.0
    %894 = vmatpush1.msra.mxu0 0.0
    %895 = vmatprep.subr.mxu0 0.0
    %896 = vmatpush1.msra.mxu0 0.0
    %897 = vmatprep.subr.mxu0 0.0
    %898 = vmatpush1.msra.mxu0 0.0
    %899 = vmatprep.subr.mxu0 0.0
    %900 = vmatpush1.msra.mxu0 0.0
    %901 = vmatprep.subr.mxu0 0.0
    %902 = vmatpush1.msra.mxu0 0.0
    %903 = vmatprep.subr.mxu0 0.0
    %904 = vmatpush1.msra.mxu0 0.0
    %905 = vmatprep.subr.mxu0 0.0
    %906 = vmatpush1.msra.mxu0 0.0
    %907 = vmatprep.subr.mxu0 0.0
    %908 = vmatpush1.msra.mxu0 0.0
    %909 = vmatprep.subr.mxu0 0.0
    %910 = vmatpush1.msra.mxu0 0.0
    %911 = vmatprep.subr.mxu0 0.0
    %912 = vmatpush1.msra.mxu0 0.0
    %913 = vmatprep.mubr.f32.mxu0 0.0
    %914 = vmatmul.mubr.f32.gmra.mrb[0].mxu0 %v208
    %v915 = vpop.f32.mrb[0].mxu0
    %v916 = vadd.f32 0.0, %v915
    %v917 = vpop.f32.mrb[0].mxu0
    %v918 = vadd.f32 0.0, %v917
    %919 = vdwg.mxu0
    %920 = vmatprep.subr.mxu0 %v95
    %921 = vmatpush1.msra.mxu0 %v94
    %922 = vmatprep.subr.mxu0 %v128
    %923 = vmatpush1.msra.mxu0 %v127
    %924 = vmatprep.subr.mxu0 %v161
    %925 = vmatpush1.msra.mxu0 %v160
    %926 = vmatprep.subr.mxu0 %v194
    %927 = vmatpush1.msra.mxu0 %v193
    %928 = vmatprep.subr.mxu0 0.0
    %929 = vmatpush1.msra.mxu0 0.0
    %930 = vmatprep.subr.mxu0 0.0
    %931 = vmatpush1.msra.mxu0 0.0
    %932 = vmatprep.subr.mxu0 0.0
    %933 = vmatpush1.msra.mxu0 0.0
    %934 = vmatprep.subr.mxu0 0.0
    %935 = vmatpush1.msra.mxu0 0.0
    %936 = vmatprep.subr.mxu0 0.0
    %937 = vmatpush1.msra.mxu0 0.0
    %938 = vmatprep.subr.mxu0 0.0
    %939 = vmatpush1.msra.mxu0 0.0
    %940 = vmatprep.subr.mxu0 0.0
    %941 = vmatpush1.msra.mxu0 0.0
    %942 = vmatprep.subr.mxu0 0.0
    %943 = vmatpush1.msra.mxu0 0.0
    %944 = vmatprep.subr.mxu0 0.0
    %945 = vmatpush1.msra.mxu0 0.0
    %946 = vmatprep.subr.mxu0 0.0
    %947 = vmatpush1.msra.mxu0 0.0
    %948 = vmatprep.subr.mxu0 0.0
    %949 = vmatpush1.msra.mxu0 0.0
    %950 = vmatprep.subr.mxu0 0.0
    %951 = vmatpush1.msra.mxu0 0.0
    %952 = vmatprep.subr.mxu0 0.0
    %953 = vmatpush1.msra.mxu0 0.0
    %954 = vmatprep.subr.mxu0 0.0
    %955 = vmatpush1.msra.mxu0 0.0
    %956 = vmatprep.subr.mxu0 0.0
    %957 = vmatpush1.msra.mxu0 0.0
    %958 = vmatprep.subr.mxu0 0.0
    %959 = vmatpush1.msra.mxu0 0.0
    %960 = vmatprep.subr.mxu0 0.0
    %961 = vmatpush1.msra.mxu0 0.0
    %962 = vmatprep.subr.mxu0 0.0
    %963 = vmatpush1.msra.mxu0 0.0
    %964 = vmatprep.subr.mxu0 0.0
    %965 = vmatpush1.msra.mxu0 0.0
    %966 = vmatprep.subr.mxu0 0.0
    %967 = vmatpush1.msra.mxu0 0.0
    %968 = vmatprep.subr.mxu0 0.0
    %969 = vmatpush1.msra.mxu0 0.0
    %970 = vmatprep.subr.mxu0 0.0
    %971 = vmatpush1.msra.mxu0 0.0
    %972 = vmatprep.subr.mxu0 0.0
    %973 = vmatpush1.msra.mxu0 0.0
    %974 = vmatprep.subr.mxu0 0.0
    %975 = vmatpush1.msra.mxu0 0.0
    %976 = vmatprep.subr.mxu0 0.0
    %977 = vmatpush1.msra.mxu0 0.0
    %978 = vmatprep.subr.mxu0 0.0
    %979 = vmatpush1.msra.mxu0 0.0
    %980 = vmatprep.subr.mxu0 0.0
    %981 = vmatpush1.msra.mxu0 0.0
    %982 = vmatprep.subr.mxu0 0.0
    %983 = vmatpush1.msra.mxu0 0.0
    %984 = vmatprep.mubr.f32.mxu0 0.0
    %985 = vmatmul.mubr.f32.gmra.mrb[0].mxu0 %v208
    %v986 = vpop.f32.mrb[0].mxu0
    %v987 = vadd.f32 0.0, %v986
    %v988 = vpop.f32.mrb[0].mxu0
    %v989 = vadd.f32 0.0, %v988
    %990 = vdwg.mxu0
    %991 = vmatprep.subr.mxu0 %v97
    %992 = vmatpush1.msra.mxu0 %v96
    %993 = vmatprep.subr.mxu0 %v130
    %994 = vmatpush1.msra.mxu0 %v129
    %995 = vmatprep.subr.mxu0 %v163
    %996 = vmatpush1.msra.mxu0 %v162
    %997 = vmatprep.subr.mxu0 %v196
    %998 = vmatpush1.msra.mxu0 %v195
    %999 = vmatprep.subr.mxu0 0.0
    %1000 = vmatpush1.msra.mxu0 0.0
    %1001 = vmatprep.subr.mxu0 0.0
    %1002 = vmatpush1.msra.mxu0 0.0
    %1003 = vmatprep.subr.mxu0 0.0
    %1004 = vmatpush1.msra.mxu0 0.0
    %1005 = vmatprep.subr.mxu0 0.0
    %1006 = vmatpush1.msra.mxu0 0.0
    %1007 = vmatprep.subr.mxu0 0.0
    %1008 = vmatpush1.msra.mxu0 0.0
    %1009 = vmatprep.subr.mxu0 0.0
    %1010 = vmatpush1.msra.mxu0 0.0
    %1011 = vmatprep.subr.mxu0 0.0
    %1012 = vmatpush1.msra.mxu0 0.0
    %1013 = vmatprep.subr.mxu0 0.0
    %1014 = vmatpush1.msra.mxu0 0.0
    %1015 = vmatprep.subr.mxu0 0.0
    %1016 = vmatpush1.msra.mxu0 0.0
    %1017 = vmatprep.subr.mxu0 0.0
    %1018 = vmatpush1.msra.mxu0 0.0
    %1019 = vmatprep.subr.mxu0 0.0
    %1020 = vmatpush1.msra.mxu0 0.0
    %1021 = vmatprep.subr.mxu0 0.0
    %1022 = vmatpush1.msra.mxu0 0.0
    %1023 = vmatprep.subr.mxu0 0.0
    %1024 = vmatpush1.msra.mxu0 0.0
    %1025 = vmatprep.subr.mxu0 0.0
    %1026 = vmatpush1.msra.mxu0 0.0
    %1027 = vmatprep.subr.mxu0 0.0
    %1028 = vmatpush1.msra.mxu0 0.0
    %1029 = vmatprep.subr.mxu0 0.0
    %1030 = vmatpush1.msra.mxu0 0.0
    %1031 = vmatprep.subr.mxu0 0.0
    %1032 = vmatpush1.msra.mxu0 0.0
    %1033 = vmatprep.subr.mxu0 0.0
    %1034 = vmatpush1.msra.mxu0 0.0
    %1035 = vmatprep.subr.mxu0 0.0
    %1036 = vmatpush1.msra.mxu0 0.0
    %1037 = vmatprep.subr.mxu0 0.0
    %1038 = vmatpush1.msra.mxu0 0.0
    %1039 = vmatprep.subr.mxu0 0.0
    %1040 = vmatpush1.msra.mxu0 0.0
    %1041 = vmatprep.subr.mxu0 0.0
    %1042 = vmatpush1.msra.mxu0 0.0
    %1043 = vmatprep.subr.mxu0 0.0
    %1044 = vmatpush1.msra.mxu0 0.0
    %1045 = vmatprep.subr.mxu0 0.0
    %1046 = vmatpush1.msra.mxu0 0.0
    %1047 = vmatprep.subr.mxu0 0.0
    %1048 = vmatpush1.msra.mxu0 0.0
    %1049 = vmatprep.subr.mxu0 0.0
    %1050 = vmatpush1.msra.mxu0 0.0
    %1051 = vmatprep.subr.mxu0 0.0
    %1052 = vmatpush1.msra.mxu0 0.0
    %1053 = vmatprep.subr.mxu0 0.0
    %1054 = vmatpush1.msra.mxu0 0.0
    %1055 = vmatprep.mubr.f32.mxu0 0.0
    %1056 = vmatmul.mubr.f32.gmra.mrb[0].mxu0 %v208
    %v1057 = vpop.f32.mrb[0].mxu0
    %v1058 = vadd.f32 0.0, %v1057
    %v1059 = vpop.f32.mrb[0].mxu0
    %v1060 = vadd.f32 0.0, %v1059
    %1061 = vdwg.mxu0
    %1062 = vmatprep.subr.mxu0 %v99
    %1063 = vmatpush1.msra.mxu0 %v98
    %1064 = vmatprep.subr.mxu0 %v132
    %1065 = vmatpush1.msra.mxu0 %v131
    %1066 = vmatprep.subr.mxu0 %v165
    %1067 = vmatpush1.msra.mxu0 %v164
    %1068 = vmatprep.subr.mxu0 %v198
    %1069 = vmatpush1.msra.mxu0 %v197
    %1070 = vmatprep.subr.mxu0 0.0
    %1071 = vmatpush1.msra.mxu0 0.0
    %1072 = vmatprep.subr.mxu0 0.0
    %1073 = vmatpush1.msra.mxu0 0.0
    %1074 = vmatprep.subr.mxu0 0.0
    %1075 = vmatpush1.msra.mxu0 0.0
    %1076 = vmatprep.subr.mxu0 0.0
    %1077 = vmatpush1.msra.mxu0 0.0
    %1078 = vmatprep.subr.mxu0 0.0
    %1079 = vmatpush1.msra.mxu0 0.0
    %1080 = vmatprep.subr.mxu0 0.0
    %1081 = vmatpush1.msra.mxu0 0.0
    %1082 = vmatprep.subr.mxu0 0.0
    %1083 = vmatpush1.msra.mxu0 0.0
    %1084 = vmatprep.subr.mxu0 0.0
    %1085 = vmatpush1.msra.mxu0 0.0
    %1086 = vmatprep.subr.mxu0 0.0
    %1087 = vmatpush1.msra.mxu0 0.0
    %1088 = vmatprep.subr.mxu0 0.0
    %1089 = vmatpush1.msra.mxu0 0.0
    %1090 = vmatprep.subr.mxu0 0.0
    %1091 = vmatpush1.msra.mxu0 0.0
    %1092 = vmatprep.subr.mxu0 0.0
    %1093 = vmatpush1.msra.mxu0 0.0
    %1094 = vmatprep.subr.mxu0 0.0
    %1095 = vmatpush1.msra.mxu0 0.0
    %1096 = vmatprep.subr.mxu0 0.0
    %1097 = vmatpush1.msra.mxu0 0.0
    %1098 = vmatprep.subr.mxu0 0.0
    %1099 = vmatpush1.msra.mxu0 0.0
    %1100 = vmatprep.subr.mxu0 0.0
    %1101 = vmatpush1.msra.mxu0 0.0
    %1102 = vmatprep.subr.mxu0 0.0
    %1103 = vmatpush1.msra.mxu0 0.0
    %1104 = vmatprep.subr.mxu0 0.0
    %1105 = vmatpush1.msra.mxu0 0.0
    %1106 = vmatprep.subr.mxu0 0.0
    %1107 = vmatpush1.msra.mxu0 0.0
    %1108 = vmatprep.subr.mxu0 0.0
    %1109 = vmatpush1.msra.mxu0 0.0
    %1110 = vmatprep.subr.mxu0 0.0
    %1111 = vmatpush1.msra.mxu0 0.0
    %1112 = vmatprep.subr.mxu0 0.0
    %1113 = vmatpush1.msra.mxu0 0.0
    %1114 = vmatprep.subr.mxu0 0.0
    %1115 = vmatpush1.msra.mxu0 0.0
    %1116 = vmatprep.subr.mxu0 0.0
    %1117 = vmatpush1.msra.mxu0 0.0
    %1118 = vmatprep.subr.mxu0 0.0
    %1119 = vmatpush1.msra.mxu0 0.0
    %1120 = vmatprep.subr.mxu0 0.0
    %1121 = vmatpush1.msra.mxu0 0.0
    %1122 = vmatprep.subr.mxu0 0.0
    %1123 = vmatpush1.msra.mxu0 0.0
    %1124 = vmatprep.subr.mxu0 0.0
    %1125 = vmatpush1.msra.mxu0 0.0
    %1126 = vmatprep.mubr.f32.mxu0 0.0
    %1127 = vmatmul.mubr.f32.gmra.mrb[0].mxu0 %v208
    %v1128 = vpop.f32.mrb[0].mxu0
    %v1129 = vadd.f32 0.0, %v1128
    %v1130 = vpop.f32.mrb[0].mxu0
    %v1131 = vadd.f32 0.0, %v1130
    %1132 = vdwg.mxu0
    %1133 = vmatprep.subr.mxu0 %v101
    %1134 = vmatpush1.msra.mxu0 %v100
    %1135 = vmatprep.subr.mxu0 %v134
    %1136 = vmatpush1.msra.mxu0 %v133
    %1137 = vmatprep.subr.mxu0 %v167
    %1138 = vmatpush1.msra.mxu0 %v166
    %1139 = vmatprep.subr.mxu0 %v200
    %1140 = vmatpush1.msra.mxu0 %v199
    %1141 = vmatprep.subr.mxu0 0.0
    %1142 = vmatpush1.msra.mxu0 0.0
    %1143 = vmatprep.subr.mxu0 0.0
    %1144 = vmatpush1.msra.mxu0 0.0
    %1145 = vmatprep.subr.mxu0 0.0
    %1146 = vmatpush1.msra.mxu0 0.0
    %1147 = vmatprep.subr.mxu0 0.0
    %1148 = vmatpush1.msra.mxu0 0.0
    %1149 = vmatprep.subr.mxu0 0.0
    %1150 = vmatpush1.msra.mxu0 0.0
    %1151 = vmatprep.subr.mxu0 0.0
    %1152 = vmatpush1.msra.mxu0 0.0
    %1153 = vmatprep.subr.mxu0 0.0
    %1154 = vmatpush1.msra.mxu0 0.0
    %1155 = vmatprep.subr.mxu0 0.0
    %1156 = vmatpush1.msra.mxu0 0.0
    %1157 = vmatprep.subr.mxu0 0.0
    %1158 = vmatpush1.msra.mxu0 0.0
    %1159 = vmatprep.subr.mxu0 0.0
    %1160 = vmatpush1.msra.mxu0 0.0
    %1161 = vmatprep.subr.mxu0 0.0
    %1162 = vmatpush1.msra.mxu0 0.0
    %1163 = vmatprep.subr.mxu0 0.0
    %1164 = vmatpush1.msra.mxu0 0.0
    %1165 = vmatprep.subr.mxu0 0.0
    %1166 = vmatpush1.msra.mxu0 0.0
    %1167 = vmatprep.subr.mxu0 0.0
    %1168 = vmatpush1.msra.mxu0 0.0
    %1169 = vmatprep.subr.mxu0 0.0
    %1170 = vmatpush1.msra.mxu0 0.0
    %1171 = vmatprep.subr.mxu0 0.0
    %1172 = vmatpush1.msra.mxu0 0.0
    %1173 = vmatprep.subr.mxu0 0.0
    %1174 = vmatpush1.msra.mxu0 0.0
    %1175 = vmatprep.subr.mxu0 0.0
    %1176 = vmatpush1.msra.mxu0 0.0
    %1177 = vmatprep.subr.mxu0 0.0
    %1178 = vmatpush1.msra.mxu0 0.0
    %1179 = vmatprep.subr.mxu0 0.0
    %1180 = vmatpush1.msra.mxu0 0.0
    %1181 = vmatprep.subr.mxu0 0.0
    %1182 = vmatpush1.msra.mxu0 0.0
    %1183 = vmatprep.subr.mxu0 0.0
    %1184 = vmatpush1.msra.mxu0 0.0
    %1185 = vmatprep.subr.mxu0 0.0
    %1186 = vmatpush1.msra.mxu0 0.0
    %1187 = vmatprep.subr.mxu0 0.0
    %1188 = vmatpush1.msra.mxu0 0.0
    %1189 = vmatprep.subr.mxu0 0.0
    %1190 = vmatpush1.msra.mxu0 0.0
    %1191 = vmatprep.subr.mxu0 0.0
    %1192 = vmatpush1.msra.mxu0 0.0
    %1193 = vmatprep.subr.mxu0 0.0
    %1194 = vmatpush1.msra.mxu0 0.0
    %1195 = vmatprep.subr.mxu0 0.0
    %1196 = vmatpush1.msra.mxu0 0.0
    %1197 = vmatprep.mubr.f32.mxu0 0.0
    %1198 = vmatmul.mubr.f32.gmra.mrb[0].mxu0 %v208
    %v1199 = vpop.f32.mrb[0].mxu0
    %v1200 = vadd.f32 0.0, %v1199
    %v1201 = vpop.f32.mrb[0].mxu0
    %v1202 = vadd.f32 0.0, %v1201
    %1203 = vdwg.mxu0
    %1204 = vmatprep.subr.mxu0 %v103
    %1205 = vmatpush1.msra.mxu0 %v102
    %1206 = vmatprep.subr.mxu0 %v136
    %1207 = vmatpush1.msra.mxu0 %v135
    %1208 = vmatprep.subr.mxu0 %v169
    %1209 = vmatpush1.msra.mxu0 %v168
    %1210 = vmatprep.subr.mxu0 %v202
    %1211 = vmatpush1.msra.mxu0 %v201
    %1212 = vmatprep.subr.mxu0 0.0
    %1213 = vmatpush1.msra.mxu0 0.0
    %1214 = vmatprep.subr.mxu0 0.0
    %1215 = vmatpush1.msra.mxu0 0.0
    %1216 = vmatprep.subr.mxu0 0.0
    %1217 = vmatpush1.msra.mxu0 0.0
    %1218 = vmatprep.subr.mxu0 0.0
    %1219 = vmatpush1.msra.mxu0 0.0
    %1220 = vmatprep.subr.mxu0 0.0
    %1221 = vmatpush1.msra.mxu0 0.0
    %1222 = vmatprep.subr.mxu0 0.0
    %1223 = vmatpush1.msra.mxu0 0.0
    %1224 = vmatprep.subr.mxu0 0.0
    %1225 = vmatpush1.msra.mxu0 0.0
    %1226 = vmatprep.subr.mxu0 0.0
    %1227 = vmatpush1.msra.mxu0 0.0
    %1228 = vmatprep.subr.mxu0 0.0
    %1229 = vmatpush1.msra.mxu0 0.0
    %1230 = vmatprep.subr.mxu0 0.0
    %1231 = vmatpush1.msra.mxu0 0.0
    %1232 = vmatprep.subr.mxu0 0.0
    %1233 = vmatpush1.msra.mxu0 0.0
    %1234 = vmatprep.subr.mxu0 0.0
    %1235 = vmatpush1.msra.mxu0 0.0
    %1236 = vmatprep.subr.mxu0 0.0
    %1237 = vmatpush1.msra.mxu0 0.0
    %1238 = vmatprep.subr.mxu0 0.0
    %1239 = vmatpush1.msra.mxu0 0.0
    %1240 = vmatprep.subr.mxu0 0.0
    %1241 = vmatpush1.msra.mxu0 0.0
    %1242 = vmatprep.subr.mxu0 0.0
    %1243 = vmatpush1.msra.mxu0 0.0
    %1244 = vmatprep.subr.mxu0 0.0
    %1245 = vmatpush1.msra.mxu0 0.0
    %1246 = vmatprep.subr.mxu0 0.0
    %1247 = vmatpush1.msra.mxu0 0.0
    %1248 = vmatprep.subr.mxu0 0.0
    %1249 = vmatpush1.msra.mxu0 0.0
    %1250 = vmatprep.subr.mxu0 0.0
    %1251 = vmatpush1.msra.mxu0 0.0
    %1252 = vmatprep.subr.mxu0 0.0
    %1253 = vmatpush1.msra.mxu0 0.0
    %1254 = vmatprep.subr.mxu0 0.0
    %1255 = vmatpush1.msra.mxu0 0.0
    %1256 = vmatprep.subr.mxu0 0.0
    %1257 = vmatpush1.msra.mxu0 0.0
    %1258 = vmatprep.subr.mxu0 0.0
    %1259 = vmatpush1.msra.mxu0 0.0
    %1260 = vmatprep.subr.mxu0 0.0
    %1261 = vmatpush1.msra.mxu0 0.0
    %1262 = vmatprep.subr.mxu0 0.0
    %1263 = vmatpush1.msra.mxu0 0.0
    %1264 = vmatprep.subr.mxu0 0.0
    %1265 = vmatpush1.msra.mxu0 0.0
    %1266 = vmatprep.subr.mxu0 0.0
    %1267 = vmatpush1.msra.mxu0 0.0
    %1268 = vmatprep.mubr.f32.mxu0 0.0
    %1269 = vmatmul.mubr.f32.gmra.mrb[0].mxu0 %v208
    %v1270 = vpop.f32.mrb[0].mxu0
    %v1271 = vadd.f32 0.0, %v1270
    %v1272 = vpop.f32.mrb[0].mxu0
    %v1273 = vadd.f32 0.0, %v1272
    %1274 = vdwg.mxu0
    %1275 = vmatprep.subr.mxu0 %v105
    %1276 = vmatpush1.msra.mxu0 %v104
    %1277 = vmatprep.subr.mxu0 %v138
    %1278 = vmatpush1.msra.mxu0 %v137
    %1279 = vmatprep.subr.mxu0 %v171
    %1280 = vmatpush1.msra.mxu0 %v170
    %1281 = vmatprep.subr.mxu0 %v204
    %1282 = vmatpush1.msra.mxu0 %v203
    %1283 = vmatprep.subr.mxu0 0.0
    %1284 = vmatpush1.msra.mxu0 0.0
    %1285 = vmatprep.subr.mxu0 0.0
    %1286 = vmatpush1.msra.mxu0 0.0
    %1287 = vmatprep.subr.mxu0 0.0
    %1288 = vmatpush1.msra.mxu0 0.0
    %1289 = vmatprep.subr.mxu0 0.0
    %1290 = vmatpush1.msra.mxu0 0.0
    %1291 = vmatprep.subr.mxu0 0.0
    %1292 = vmatpush1.msra.mxu0 0.0
    %1293 = vmatprep.subr.mxu0 0.0
    %1294 = vmatpush1.msra.mxu0 0.0
    %1295 = vmatprep.subr.mxu0 0.0
    %1296 = vmatpush1.msra.mxu0 0.0
    %1297 = vmatprep.subr.mxu0 0.0
    %1298 = vmatpush1.msra.mxu0 0.0
    %1299 = vmatprep.subr.mxu0 0.0
    %1300 = vmatpush1.msra.mxu0 0.0
    %1301 = vmatprep.subr.mxu0 0.0
    %1302 = vmatpush1.msra.mxu0 0.0
    %1303 = vmatprep.subr.mxu0 0.0
    %1304 = vmatpush1.msra.mxu0 0.0
    %1305 = vmatprep.subr.mxu0 0.0
    %1306 = vmatpush1.msra.mxu0 0.0
    %1307 = vmatprep.subr.mxu0 0.0
    %1308 = vmatpush1.msra.mxu0 0.0
    %1309 = vmatprep.subr.mxu0 0.0
    %1310 = vmatpush1.msra.mxu0 0.0
    %1311 = vmatprep.subr.mxu0 0.0
    %1312 = vmatpush1.msra.mxu0 0.0
    %1313 = vmatprep.subr.mxu0 0.0
    %1314 = vmatpush1.msra.mxu0 0.0
    %1315 = vmatprep.subr.mxu0 0.0
    %1316 = vmatpush1.msra.mxu0 0.0
    %1317 = vmatprep.subr.mxu0 0.0
    %1318 = vmatpush1.msra.mxu0 0.0
    %1319 = vmatprep.subr.mxu0 0.0
    %1320 = vmatpush1.msra.mxu0 0.0
    %1321 = vmatprep.subr.mxu0 0.0
    %1322 = vmatpush1.msra.mxu0 0.0
    %1323 = vmatprep.subr.mxu0 0.0
    %1324 = vmatpush1.msra.mxu0 0.0
    %1325 = vmatprep.subr.mxu0 0.0
    %1326 = vmatpush1.msra.mxu0 0.0
    %1327 = vmatprep.subr.mxu0 0.0
    %1328 = vmatpush1.msra.mxu0 0.0
    %1329 = vmatprep.subr.mxu0 0.0
    %1330 = vmatpush1.msra.mxu0 0.0
    %1331 = vmatprep.subr.mxu0 0.0
    %1332 = vmatpush1.msra.mxu0 0.0
    %1333 = vmatprep.subr.mxu0 0.0
    %1334 = vmatpush1.msra.mxu0 0.0
    %1335 = vmatprep.subr.mxu0 0.0
    %1336 = vmatpush1.msra.mxu0 0.0
    %1337 = vmatprep.subr.mxu0 0.0
    %1338 = vmatpush1.msra.mxu0 0.0
    %1339 = vmatprep.mubr.f32.mxu0 0.0
    %1340 = vmatmul.mubr.f32.gmra.mrb[0].mxu0 %v208
    %v1341 = vpop.f32.mrb[0].mxu0
    %v1342 = vadd.f32 0.0, %v1341
    %v1343 = vpop.f32.mrb[0].mxu0
    %v1344 = vadd.f32 0.0, %v1343
    %1345 = vdwg.mxu0
    %1346 = vmatprep.subr.mxu0 0.0
    %1347 = vmatpush1.msra.mxu0 %v106
    %1348 = vmatprep.subr.mxu0 0.0
    %1349 = vmatpush1.msra.mxu0 %v139
    %1350 = vmatprep.subr.mxu0 0.0
    %1351 = vmatpush1.msra.mxu0 %v172
    %1352 = vmatprep.subr.mxu0 0.0
    %1353 = vmatpush1.msra.mxu0 %v205
    %1354 = vmatprep.subr.mxu0 0.0
    %1355 = vmatpush1.msra.mxu0 0.0
    %1356 = vmatprep.subr.mxu0 0.0
    %1357 = vmatpush1.msra.mxu0 0.0
    %1358 = vmatprep.subr.mxu0 0.0
    %1359 = vmatpush1.msra.mxu0 0.0
    %1360 = vmatprep.subr.mxu0 0.0
    %1361 = vmatpush1.msra.mxu0 0.0
    %1362 = vmatprep.subr.mxu0 0.0
    %1363 = vmatpush1.msra.mxu0 0.0
    %1364 = vmatprep.subr.mxu0 0.0
    %1365 = vmatpush1.msra.mxu0 0.0
    %1366 = vmatprep.subr.mxu0 0.0
    %1367 = vmatpush1.msra.mxu0 0.0
    %1368 = vmatprep.subr.mxu0 0.0
    %1369 = vmatpush1.msra.mxu0 0.0
    %1370 = vmatprep.subr.mxu0 0.0
    %1371 = vmatpush1.msra.mxu0 0.0
    %1372 = vmatprep.subr.mxu0 0.0
    %1373 = vmatpush1.msra.mxu0 0.0
    %1374 = vmatprep.subr.mxu0 0.0
    %1375 = vmatpush1.msra.mxu0 0.0
    %1376 = vmatprep.subr.mxu0 0.0
    %1377 = vmatpush1.msra.mxu0 0.0
    %1378 = vmatprep.subr.mxu0 0.0
    %1379 = vmatpush1.msra.mxu0 0.0
    %1380 = vmatprep.subr.mxu0 0.0
    %1381 = vmatpush1.msra.mxu0 0.0
    %1382 = vmatprep.subr.mxu0 0.0
    %1383 = vmatpush1.msra.mxu0 0.0
    %1384 = vmatprep.subr.mxu0 0.0
    %1385 = vmatpush1.msra.mxu0 0.0
    %1386 = vmatprep.subr.mxu0 0.0
    %1387 = vmatpush1.msra.mxu0 0.0
    %1388 = vmatprep.subr.mxu0 0.0
    %1389 = vmatpush1.msra.mxu0 0.0
    %1390 = vmatprep.subr.mxu0 0.0
    %1391 = vmatpush1.msra.mxu0 0.0
    %1392 = vmatprep.subr.mxu0 0.0
    %1393 = vmatpush1.msra.mxu0 0.0
    %1394 = vmatprep.subr.mxu0 0.0
    %1395 = vmatpush1.msra.mxu0 0.0
    %1396 = vmatprep.subr.mxu0 0.0
    %1397 = vmatpush1.msra.mxu0 0.0
    %1398 = vmatprep.subr.mxu0 0.0
    %1399 = vmatpush1.msra.mxu0 0.0
    %1400 = vmatprep.subr.mxu0 0.0
    %1401 = vmatpush1.msra.mxu0 0.0
    %1402 = vmatprep.subr.mxu0 0.0
    %1403 = vmatpush1.msra.mxu0 0.0
    %1404 = vmatprep.subr.mxu0 0.0
    %1405 = vmatpush1.msra.mxu0 0.0
    %1406 = vmatprep.subr.mxu0 0.0
    %1407 = vmatpush1.msra.mxu0 0.0
    %1408 = vmatprep.subr.mxu0 0.0
    %1409 = vmatpush1.msra.mxu0 0.0
    %1410 = vmatprep.mubr.f32.mxu0 0.0
    %1411 = vmatmul.mubr.f32.gmra.mrb[0].mxu0 %v208
    %v1412 = vpop.f32.mrb[0].mxu0
    %v1413 = vadd.f32 0.0, %v1412
    %v1414 = vpop.f32.mrb[0].mxu0
    %1415 = vdwg.mxu0
    %1416 = vst [vmem:[#allocation2] sm:$0xff] %v277
    %1417 = vst [vmem:[#allocation2 + $0x8] sm:$0xff] %v279
    %1418 = vst [vmem:[#allocation2 + $0x10] sm:$0xff] %v348
    %1419 = vst [vmem:[#allocation2 + $0x18] sm:$0xff] %v350
    %1420 = vst [vmem:[#allocation2 + $0x20] sm:$0xff] %v419
    %1421 = vst [vmem:[#allocation2 + $0x28] sm:$0xff] %v421
    %1422 = vst [vmem:[#allocation2 + $0x30] sm:$0xff] %v490
    %1423 = vst [vmem:[#allocation2 + $0x38] sm:$0xff] %v492
    %1424 = vst [vmem:[#allocation2 + $0x40] sm:$0xff] %v561
    %1425 = vst [vmem:[#allocation2 + $0x48] sm:$0xff] %v563
    %1426 = vst [vmem:[#allocation2 + $0x50] sm:$0xff] %v632
    %1427 = vst [vmem:[#allocation2 + $0x58] sm:$0xff] %v634
    %1428 = vst [vmem:[#allocation2 + $0x60] sm:$0xff] %v703
    %1429 = vst [vmem:[#allocation2 + $0x68] sm:$0xff] %v705
    %1430 = vst [vmem:[#allocation2 + $0x70] sm:$0xff] %v774
    %1431 = vst [vmem:[#allocation2 + $0x78] sm:$0xff] %v776
    %1432 = vst [vmem:[#allocation2 + $0x80] sm:$0xff] %v845
    %1433 = vst [vmem:[#allocation2 + $0x88] sm:$0xff] %v847
    %1434 = vst [vmem:[#allocation2 + $0x90] sm:$0xff] %v916
    %1435 = vst [vmem:[#allocation2 + $0x98] sm:$0xff] %v918
    %1436 = vst [vmem:[#allocation2 + $0xa0] sm:$0xff] %v987
    %1437 = vst [vmem:[#allocation2 + $0xa8] sm:$0xff] %v989
    %1438 = vst [vmem:[#allocation2 + $0xb0] sm:$0xff] %v1058
    %1439 = vst [vmem:[#allocation2 + $0xb8] sm:$0xff] %v1060
    %1440 = vst [vmem:[#allocation2 + $0xc0] sm:$0xff] %v1129
    %1441 = vst [vmem:[#allocation2 + $0xc8] sm:$0xff] %v1131
    %1442 = vst [vmem:[#allocation2 + $0xd0] sm:$0xff] %v1200
    %1443 = vst [vmem:[#allocation2 + $0xd8] sm:$0xff] %v1202
    %1444 = vst [vmem:[#allocation2 + $0xe0] sm:$0xff] %v1271
    %1445 = vst [vmem:[#allocation2 + $0xe8] sm:$0xff] %v1273
    %1446 = vst [vmem:[#allocation2 + $0xf0] sm:$0xff] %v1342
    %1447 = vst [vmem:[#allocation2 + $0xf8] sm:$0xff] %v1344
    %1448 = vst [vmem:[#allocation2 + $0x100] sm:$0xff] %v1413
    %v1449 = vld [vmem:[#allocation9] sm:$0xff]
    %v1450 = vld [vmem:[#allocation9 + $0x8] sm:$0xff]
    %v1451 = vld [vmem:[#allocation9 + $0x10] sm:$0xff]
    %v1452 = vld [vmem:[#allocation9 + $0x18] sm:$0xff]
    %v1453 = vld [vmem:[#allocation2 + $0x100] sm:$0xff]
    %v1455 = vsel %vm206, %v72, 0
    %1457 = vmatprep.subr.mxu0 0.0
    %1458 = vmatpush1.msra.mxu0 %v1449
    %1459 = vmatprep.subr.mxu0 0.0
    %1460 = vmatpush1.msra.mxu0 %v1450
    %1461 = vmatprep.subr.mxu0 0.0
    %1462 = vmatpush1.msra.mxu0 %v1451
    %1463 = vmatprep.subr.mxu0 0.0
    %1464 = vmatpush1.msra.mxu0 %v1452
    %1465 = vmatprep.subr.mxu0 0.0
    %1466 = vmatpush1.msra.mxu0 0.0
    %1467 = vmatprep.subr.mxu0 0.0
    %1468 = vmatpush1.msra.mxu0 0.0
    %1469 = vmatprep.subr.mxu0 0.0
    %1470 = vmatpush1.msra.mxu0 0.0
    %1471 = vmatprep.subr.mxu0 0.0
    %1472 = vmatpush1.msra.mxu0 0.0
    %1473 = vmatprep.subr.mxu0 0.0
    %1474 = vmatpush1.msra.mxu0 0.0
    %1475 = vmatprep.subr.mxu0 0.0
    %1476 = vmatpush1.msra.mxu0 0.0
    %1477 = vmatprep.subr.mxu0 0.0
    %1478 = vmatpush1.msra.mxu0 0.0
    %1479 = vmatprep.subr.mxu0 0.0
    %1480 = vmatpush1.msra.mxu0 0.0
    %1481 = vmatprep.subr.mxu0 0.0
    %1482 = vmatpush1.msra.mxu0 0.0
    %1483 = vmatprep.subr.mxu0 0.0
    %1484 = vmatpush1.msra.mxu0 0.0
    %1485 = vmatprep.subr.mxu0 0.0
    %1486 = vmatpush1.msra.mxu0 0.0
    %1487 = vmatprep.subr.mxu0 0.0
    %1488 = vmatpush1.msra.mxu0 0.0
    %1489 = vmatprep.subr.mxu0 0.0
    %1490 = vmatpush1.msra.mxu0 0.0
    %1491 = vmatprep.subr.mxu0 0.0
    %1492 = vmatpush1.msra.mxu0 0.0
    %1493 = vmatprep.subr.mxu0 0.0
    %1494 = vmatpush1.msra.mxu0 0.0
    %1495 = vmatprep.subr.mxu0 0.0
    %1496 = vmatpush1.msra.mxu0 0.0
    %1497 = vmatprep.subr.mxu0 0.0
    %1498 = vmatpush1.msra.mxu0 0.0
    %1499 = vmatprep.subr.mxu0 0.0
    %1500 = vmatpush1.msra.mxu0 0.0
    %1501 = vmatprep.subr.mxu0 0.0
    %1502 = vmatpush1.msra.mxu0 0.0
    %1503 = vmatprep.subr.mxu0 0.0
    %1504 = vmatpush1.msra.mxu0 0.0
    %1505 = vmatprep.subr.mxu0 0.0
    %1506 = vmatpush1.msra.mxu0 0.0
    %1507 = vmatprep.subr.mxu0 0.0
    %1508 = vmatpush1.msra.mxu0 0.0
    %1509 = vmatprep.subr.mxu0 0.0
    %1510 = vmatpush1.msra.mxu0 0.0
    %1511 = vmatprep.subr.mxu0 0.0
    %1512 = vmatpush1.msra.mxu0 0.0
    %1513 = vmatprep.subr.mxu0 0.0
    %1514 = vmatpush1.msra.mxu0 0.0
    %1515 = vmatprep.subr.mxu0 0.0
    %1516 = vmatpush1.msra.mxu0 0.0
    %1517 = vmatprep.subr.mxu0 0.0
    %1518 = vmatpush1.msra.mxu0 0.0
    %1519 = vmatprep.subr.mxu0 0.0
    %1520 = vmatpush1.msra.mxu0 0.0
    %1521 = vmatprep.mubr.f32.mxu0 0.0
    %1522 = vmatmul.mubr.f32.gmra.mrb[0].mxu0 %v1455
    %v1523 = vpop.f32.mrb[0].mxu0
    %v1524 = vadd.f32 %v1453, %v1523
    %v1525 = vpop.f32.mrb[0].mxu0
    %1526 = vdwg.mxu0
    %v1527 = vld [vmem:[%s4] sm:$0x1]
    %v1529 = vlaneseq
    %v1530 = vshrl.u32 %v1529, 7
    %v1531 = vsub.s32 0, %v1530
    %v1532 = vrot.slane %v1527, %v1531
    %v1534 = vadd.f32 %v1524, %v1532
    %v1535 = vld [vmem:[#allocation2] sm:$0xff]
    %1536 = vset.pattern.permute.xlu0 0
    %1537 = vperm.xlu0 %1536, %v72
    %v1538 = vpop.permute.xlu0 %1537
    %v1540 = vmul.f32 %v1538, %v1535
    %v1541 = vadd.f32 %v1534, %v1540
    %v1542 = vld [vmem:[#allocation2 + $0x8] sm:$0xff]
    %1543 = vset.pattern.permute.xlu0 1
    %1544 = vperm.xlu0 %1543, %v72
    %v1545 = vpop.permute.xlu0 %1544
    %v1547 = vmul.f32 %v1545, %v1542
    %v1548 = vadd.f32 %v1541, %v1547
    %v1549 = vld [vmem:[#allocation2 + $0x10] sm:$0xff]
    %1550 = vset.pattern.permute.xlu0 2
    %1551 = vperm.xlu0 %1550, %v72
    %v1552 = vpop.permute.xlu0 %1551
    %v1554 = vmul.f32 %v1552, %v1549
    %v1555 = vadd.f32 %v1548, %v1554
    %v1556 = vld [vmem:[#allocation2 + $0x18] sm:$0xff]
    %1557 = vset.pattern.permute.xlu0 3
    %1558 = vperm.xlu0 %1557, %v72
    %v1559 = vpop.permute.xlu0 %1558
    %v1561 = vmul.f32 %v1559, %v1556
    %v1562 = vadd.f32 %v1555, %v1561
    %v1563 = vld [vmem:[#allocation2 + $0x20] sm:$0xff]
    %1564 = vset.pattern.permute.xlu0 4
    %1565 = vperm.xlu0 %1564, %v72
    %v1566 = vpop.permute.xlu0 %1565
    %v1568 = vmul.f32 %v1566, %v1563
    %v1569 = vadd.f32 %v1562, %v1568
    %v1570 = vld [vmem:[#allocation2 + $0x28] sm:$0xff]
    %1571 = vset.pattern.permute.xlu0 5
    %1572 = vperm.xlu0 %1571, %v72
    %v1573 = vpop.permute.xlu0 %1572
    %v1575 = vmul.f32 %v1573, %v1570
    %v1576 = vadd.f32 %v1569, %v1575
    %v1577 = vld [vmem:[#allocation2 + $0x30] sm:$0xff]
    %1578 = vset.pattern.permute.xlu0 6
    %1579 = vperm.xlu0 %1578, %v72
    %v1580 = vpop.permute.xlu0 %1579
    %v1582 = vmul.f32 %v1580, %v1577
    %v1583 = vadd.f32 %v1576, %v1582
    %v1584 = vld [vmem:[#allocation2 + $0x38] sm:$0xff]
    %1585 = vset.pattern.permute.xlu0 7
    %1586 = vperm.xlu0 %1585, %v72
    %v1587 = vpop.permute.xlu0 %1586
    %v1589 = vmul.f32 %v1587, %v1584
    %v1590 = vadd.f32 %v1583, %v1589
    %v1591 = vld [vmem:[#allocation2 + $0x40] sm:$0xff]
    %1592 = vset.pattern.permute.xlu0 8
    %1593 = vperm.xlu0 %1592, %v72
    %v1594 = vpop.permute.xlu0 %1593
    %v1596 = vmul.f32 %v1594, %v1591
    %v1597 = vadd.f32 %v1590, %v1596
    %v1598 = vld [vmem:[#allocation2 + $0x48] sm:$0xff]
    %1599 = vset.pattern.permute.xlu0 9
    %1600 = vperm.xlu0 %1599, %v72
    %v1601 = vpop.permute.xlu0 %1600
    %v1603 = vmul.f32 %v1601, %v1598
    %v1604 = vadd.f32 %v1597, %v1603
    %v1605 = vld [vmem:[#allocation2 + $0x50] sm:$0xff]
    %1606 = vset.pattern.permute.xlu0 10
    %1607 = vperm.xlu0 %1606, %v72
    %v1608 = vpop.permute.xlu0 %1607
    %v1610 = vmul.f32 %v1608, %v1605
    %v1611 = vadd.f32 %v1604, %v1610
    %v1612 = vld [vmem:[#allocation2 + $0x58] sm:$0xff]
    %1613 = vset.pattern.permute.xlu0 11
    %1614 = vperm.xlu0 %1613, %v72
    %v1615 = vpop.permute.xlu0 %1614
    %v1617 = vmul.f32 %v1615, %v1612
    %v1618 = vadd.f32 %v1611, %v1617
    %v1619 = vld [vmem:[#allocation2 + $0x60] sm:$0xff]
    %1620 = vset.pattern.permute.xlu0 12
    %1621 = vperm.xlu0 %1620, %v72
    %v1622 = vpop.permute.xlu0 %1621
    %v1624 = vmul.f32 %v1622, %v1619
    %v1625 = vadd.f32 %v1618, %v1624
    %v1626 = vld [vmem:[#allocation2 + $0x68] sm:$0xff]
    %1627 = vset.pattern.permute.xlu0 13
    %1628 = vperm.xlu0 %1627, %v72
    %v1629 = vpop.permute.xlu0 %1628
    %v1631 = vmul.f32 %v1629, %v1626
    %v1632 = vadd.f32 %v1625, %v1631
    %v1633 = vld [vmem:[#allocation2 + $0x70] sm:$0xff]
    %1634 = vset.pattern.permute.xlu0 14
    %1635 = vperm.xlu0 %1634, %v72
    %v1636 = vpop.permute.xlu0 %1635
    %v1638 = vmul.f32 %v1636, %v1633
    %v1639 = vadd.f32 %v1632, %v1638
    %v1640 = vld [vmem:[#allocation2 + $0x78] sm:$0xff]
    %1641 = vset.pattern.permute.xlu0 15
    %1642 = vperm.xlu0 %1641, %v72
    %v1643 = vpop.permute.xlu0 %1642
    %v1645 = vmul.f32 %v1643, %v1640
    %v1646 = vadd.f32 %v1639, %v1645
    %v1647 = vld [vmem:[#allocation2 + $0x80] sm:$0xff]
    %1648 = vset.pattern.permute.xlu0 16
    %1649 = vperm.xlu0 %1648, %v72
    %v1650 = vpop.permute.xlu0 %1649
    %v1652 = vmul.f32 %v1650, %v1647
    %v1653 = vadd.f32 %v1646, %v1652
    %v1654 = vld [vmem:[#allocation2 + $0x88] sm:$0xff]
    %1655 = vset.pattern.permute.xlu0 17
    %1656 = vperm.xlu0 %1655, %v72
    %v1657 = vpop.permute.xlu0 %1656
    %v1659 = vmul.f32 %v1657, %v1654
    %v1660 = vadd.f32 %v1653, %v1659
    %v1661 = vld [vmem:[#allocation2 + $0x90] sm:$0xff]
    %1662 = vset.pattern.permute.xlu0 18
    %1663 = vperm.xlu0 %1662, %v72
    %v1664 = vpop.permute.xlu0 %1663
    %v1666 = vmul.f32 %v1664, %v1661
    %v1667 = vadd.f32 %v1660, %v1666
    %v1668 = vld [vmem:[#allocation2 + $0x98] sm:$0xff]
    %1669 = vset.pattern.permute.xlu0 19
    %1670 = vperm.xlu0 %1669, %v72
    %v1671 = vpop.permute.xlu0 %1670
    %v1673 = vmul.f32 %v1671, %v1668
    %v1674 = vadd.f32 %v1667, %v1673
    %v1675 = vld [vmem:[#allocation2 + $0xa0] sm:$0xff]
    %1676 = vset.pattern.permute.xlu0 20
    %1677 = vperm.xlu0 %1676, %v72
    %v1678 = vpop.permute.xlu0 %1677
    %v1680 = vmul.f32 %v1678, %v1675
    %v1681 = vadd.f32 %v1674, %v1680
    %v1682 = vld [vmem:[#allocation2 + $0xa8] sm:$0xff]
    %1683 = vset.pattern.permute.xlu0 21
    %1684 = vperm.xlu0 %1683, %v72
    %v1685 = vpop.permute.xlu0 %1684
    %v1687 = vmul.f32 %v1685, %v1682
    %v1688 = vadd.f32 %v1681, %v1687
    %v1689 = vld [vmem:[#allocation2 + $0xb0] sm:$0xff]
    %1690 = vset.pattern.permute.xlu0 22
    %1691 = vperm.xlu0 %1690, %v72
    %v1692 = vpop.permute.xlu0 %1691
    %v1694 = vmul.f32 %v1692, %v1689
    %v1695 = vadd.f32 %v1688, %v1694
    %v1696 = vld [vmem:[#allocation2 + $0xb8] sm:$0xff]
    %1697 = vset.pattern.permute.xlu0 23
    %1698 = vperm.xlu0 %1697, %v72
    %v1699 = vpop.permute.xlu0 %1698
    %v1701 = vmul.f32 %v1699, %v1696
    %v1702 = vadd.f32 %v1695, %v1701
    %v1703 = vld [vmem:[#allocation2 + $0xc0] sm:$0xff]
    %1704 = vset.pattern.permute.xlu0 24
    %1705 = vperm.xlu0 %1704, %v72
    %v1706 = vpop.permute.xlu0 %1705
    %v1708 = vmul.f32 %v1706, %v1703
    %v1709 = vadd.f32 %v1702, %v1708
    %v1710 = vld [vmem:[#allocation2 + $0xc8] sm:$0xff]
    %1711 = vset.pattern.permute.xlu0 25
    %1712 = vperm.xlu0 %1711, %v72
    %v1713 = vpop.permute.xlu0 %1712
    %v1715 = vmul.f32 %v1713, %v1710
    %v1716 = vadd.f32 %v1709, %v1715
    %v1717 = vld [vmem:[#allocation2 + $0xd0] sm:$0xff]
    %1718 = vset.pattern.permute.xlu0 26
    %1719 = vperm.xlu0 %1718, %v72
    %v1720 = vpop.permute.xlu0 %1719
    %v1722 = vmul.f32 %v1720, %v1717
    %v1723 = vadd.f32 %v1716, %v1722
    %v1724 = vld [vmem:[#allocation2 + $0xd8] sm:$0xff]
    %1725 = vset.pattern.permute.xlu0 27
    %1726 = vperm.xlu0 %1725, %v72
    %v1727 = vpop.permute.xlu0 %1726
    %v1729 = vmul.f32 %v1727, %v1724
    %v1730 = vadd.f32 %v1723, %v1729
    %v1731 = vld [vmem:[#allocation2 + $0xe0] sm:$0xff]
    %1732 = vset.pattern.permute.xlu0 28
    %1733 = vperm.xlu0 %1732, %v72
    %v1734 = vpop.permute.xlu0 %1733
    %v1736 = vmul.f32 %v1734, %v1731
    %v1737 = vadd.f32 %v1730, %v1736
    %v1738 = vld [vmem:[#allocation2 + $0xe8] sm:$0xff]
    %1739 = vset.pattern.permute.xlu0 29
    %1740 = vperm.xlu0 %1739, %v72
    %v1741 = vpop.permute.xlu0 %1740
    %v1743 = vmul.f32 %v1741, %v1738
    %v1744 = vadd.f32 %v1737, %v1743
    %v1745 = vld [vmem:[#allocation2 + $0xf0] sm:$0xff]
    %1746 = vset.pattern.permute.xlu0 30
    %1747 = vperm.xlu0 %1746, %v72
    %v1748 = vpop.permute.xlu0 %1747
    %v1750 = vmul.f32 %v1748, %v1745
    %v1751 = vadd.f32 %v1744, %v1750
    %v1752 = vld [vmem:[#allocation2 + $0xf8] sm:$0xff]
    %1753 = vset.pattern.permute.xlu0 31
    %1754 = vperm.xlu0 %1753, %v72
    %v1755 = vpop.permute.xlu0 %1754
    %v1757 = vmul.f32 %v1755, %v1752
    %v1758 = vadd.f32 %v1751, %v1757
    %1759 = vst [vmem:[#allocation11] sm:$0xff] %v1758
    // Predicated region
    $region38: #{tpu_custom_call.1} parent=1 // pred_check
      _
    $region39: #{tpu_custom_call.1} parent=1 // pred_check_branch
      %1761 = sbr.rel (0) target = $region41
    $region40: #{tpu_custom_call.1} parent=1 // pred_region
      %s1763 = ssub.s32 128, 128
      %1764 = vsyncadd [#allocation5], %s1763
      %s1766 = sshll.u32 [#allocation11], 4
      %s1767 = int_to_ptr.vmem [resolvable:$true] %s1766
      %1769 = dma.vmem_to_hbm [thread:$0]  %s1767, 128, %s5, [#allocation5]
    $region41: #{tpu_custom_call.1} parent=1 // pred_fallthru
      _
    // Predicated region
    $region42: #{tpu_custom_call.1} parent=1 // pred_check
      _
    $region43: #{tpu_custom_call.1} parent=1 // pred_check_branch
      %1771 = sbr.rel (0) target = $region45
    $region44: #{tpu_custom_call.1} parent=1 // pred_region
      %1772 = dma.done [#allocation5], 128
    $region45: #{tpu_custom_call.1} parent=1 // pred_fallthru
      _
    %1773 = vsyncpa [#allocation4], 1
    %1774 = vsyncpa [#allocation7], 1
    %1775 = vsyncpa [#allocation10], 1
    %1776 = vsyncpa [#allocation5], 1

</llo_original>
